<compile_context>
chip_gen: v6e
topology: v6e:2x2x1
jax: 0.10.0
libtpu: 0.0.40
codegen_flags: <defaults>
</compile_context>

<pallas_src>
import functools

import jax
import jax.numpy as jnp
from jax.experimental import pallas as pl
from jax.experimental.pallas import tpu as pltpu


def _round_up(v, m):
    return ((v + m - 1) // m) * m


def _link_attention_kernel(x_ref, m_ref, wq_ref, bq_ref, out_ref, a_ref, *, L):
    # x_ref : (TB, Lp, Dp)   m_ref : (TB, HM, Lp) with HM in {1, H}
    # wq_ref: (Dp, H)        bq_ref: (1, H)
    # out_ref: (TB, Dp)      a_ref : (TB, H, Lp)
    TB, Lp, Dp = x_ref.shape
    H = wq_ref.shape[1]

    # Upcast after the HBM->VMEM load (x may arrive in bf16).
    x = x_ref[...].astype(jnp.float32)                               # (TB, Lp, Dp)

    # query = x @ Wq + b as a single MXU call over all TB*Lp rows.
    q = jnp.dot(x.reshape(TB * Lp, Dp), wq_ref[...],
                preferred_element_type=jnp.float32) + bq_ref[...]    # (TB*Lp, H)
    q = jnp.transpose(q.reshape(TB, Lp, H), (0, 2, 1))               # (TB, H, Lp)

    # Masked logits; (TB, HM, Lp) broadcasts over heads if HM == 1.  Padded L
    # lanes carry mask == 0 -> -9e15, matching real masked positions.
    e = jnp.where(m_ref[...] > 0.5, q, -9.0e15)                      # (TB, H, Lp)

    # Softmax over the lane-dense (padded) L axis.  Padded lanes are excluded
    # from the denominator so a fully-masked row stays uniform 1/L (PyTorch).
    e_max = jnp.max(e, axis=-1, keepdims=True)
    p = jnp.exp(e - e_max)
    if Lp > L:
        lane = jax.lax.broadcasted_iota(jnp.int32, p.shape, 2)
        p = jnp.where(lane < L, p, 0.0)
    denom = jnp.sum(p, axis=-1, keepdims=True)
    r = pl.reciprocal(denom, approx=True)                            # EUP vrcp
    r = r * (2.0 - denom * r)                                        # one Newton step
    a = p * r                                                        # (TB, H, Lp)
    a_ref[...] = a.astype(a_ref.dtype)

    # sum_h (a_h @ x) == (sum_h a_h) @ x, done on the VPU (mul + sublane reduce)
    # instead of TB serialized M=1 MXU matmuls.
    a_sum = jnp.sum(a, axis=1)                                       # (TB, Lp)
    out = jnp.sum(a_sum[:, :, None] * x, axis=1)                     # (TB, Dp)
    out_ref[...] = out.astype(out_ref.dtype)


def _choose_block_batch(B, Lp, Dp, H, HM, x_bytes, m_bytes, out_bytes,
                        budget_bytes, want_even_grid):
    """Largest sublane-aligned TB fitting the per-generation VMEM block budget.

    Counts double-buffered in/out blocks plus the in-kernel f32 intermediates.
    On v7x we additionally prefer an even grid so both TensorCores get work.
    """
    per_row = (2 * (x_bytes * Lp * Dp + m_bytes * HM * Lp + 4 * H * Lp + out_bytes * Dp)
               + 4 * Lp * Dp + 8 * H * Lp)
    tb = max(1, budget_bytes // max(per_row, 1))
    tb = min(tb, B)
    tb = _round_up(tb, 8)                      # full-sublane, unmasked stores
    if want_even_grid:
        t = tb
        while t > 8 and pl.cdiv(B, t) % 2 != 0:
            t -= 8
        if pl.cdiv(B, t) % 2 == 0:
            tb = t
    return int(tb)


def link_attention_drug(x, masks, wq, bq):
    """x: (B, L, D); masks broadcastable to (B, H, L); wq: (D, H); bq: (H,)."""
    x = jnp.asarray(x)                          # keep caller dtype (bf16 stays bf16)
    wq = jnp.asarray(wq, jnp.float32)
    B, L, D = x.shape
    H = wq.shape[1]

    # Normalize mask layout WITHOUT materializing an H-fold broadcast in HBM.
    m = jnp.asarray(masks)
    if m.ndim == 2:                             # (B, L) padding mask
        m = m[:, None, :]
    elif m.ndim == 3 and m.shape[1] in (1, H):
        pass
    else:
        m = jnp.broadcast_to(m, (B, H, L))
    HM = m.shape[1]
    if m.dtype in (jnp.dtype(jnp.bfloat16), jnp.dtype(jnp.float16)):
        pass                                    # already narrow
    elif HM == H and H > 1:
        m = m.astype(jnp.bfloat16)              # cut full-mask DMA bytes
    else:
        m = m.astype(jnp.float32)

    bq2 = jnp.asarray(bq, jnp.float32).reshape(1, H)

    # Lane-dense padding of L and D so a/out stores are unmasked full vst.
    Lp = _round_up(L, 128)
    Dp = _round_up(D, 128)

    kind = ""
    try:
        kind = jax.devices()[0].device_kind.lower()
    except Exception:
        pass
    is_v7x = "v7" in kind
    if is_v7x:
        # 64 MiB VMEM/TC: conservative blocks, headroom in the scoped limit.
        budget_bytes, vmem_limit = 16 << 20, 48 << 20
    else:
        # v5e / v6e: 128 MiB VMEM, single TensorCore: go big, no >=2-step shrink.
        budget_bytes, vmem_limit = 32 << 20, 100 << 20

    out_bytes = x.dtype.itemsize
    tb = _choose_block_batch(B, Lp, Dp, H, HM, x.dtype.itemsize, m.dtype.itemsize,
                             out_bytes, budget_bytes, is_v7x)
    n_blk = pl.cdiv(B, tb)
    Bp = n_blk * tb

    x_p = x if (Bp, Lp, Dp) == (B, L, D) else jnp.pad(
        x, ((0, Bp - B), (0, Lp - L), (0, Dp - D)))
    m_p = m if (Bp, Lp) == (B, L) else jnp.pad(
        m, ((0, Bp - B), (0, 0), (0, Lp - L)))
    wq_p = wq if Dp == D else jnp.pad(wq, ((0, Dp - D), (0, 0)))

    cost = pl.CostEstimate(
        flops=2 * Bp * Lp * Dp * (H + 1),
        transcendentals=Bp * H * Lp,
        bytes_accessed=(x_p.size * x_p.dtype.itemsize
                        + m_p.size * m_p.dtype.itemsize
                        + wq_p.size * 4
                        + Bp * Dp * out_bytes
                        + Bp * H * Lp * 4),
    )

    out, a = pl.pallas_call(
        functools.partial(_link_attention_kernel, L=L),
        out_shape=(
            jax.ShapeDtypeStruct((Bp, Dp), x.dtype),
            jax.ShapeDtypeStruct((Bp, H, Lp), jnp.float32),
        ),
        grid_spec=pltpu.PrefetchScalarGridSpec(
            num_scalar_prefetch=0,
            grid=(n_blk,),
            in_specs=[
                pl.BlockSpec((tb, Lp, Dp), lambda b: (b, 0, 0)),
                pl.BlockSpec((tb, HM, Lp), lambda b: (b, 0, 0)),
                pl.BlockSpec((Dp, H), lambda b: (0, 0)),
                pl.BlockSpec((1, H), lambda b: (0, 0)),
            ],
            out_specs=[
                pl.BlockSpec((tb, Dp), lambda b: (b, 0)),
                pl.BlockSpec((tb, H, Lp), lambda b: (b, 0, 0)),
            ],
        ),
        compiler_params=pltpu.CompilerParams(
            dimension_semantics=("parallel",),
            vmem_limit_bytes=vmem_limit,
        ),
        cost_estimate=cost,
    )(x_p, m_p, wq_p, bq2)

    out = out[:B, :D]
    a = a[:B, :, :L]
    # PyTorch: torch.sum(out, dim=1).squeeze()
    return jnp.squeeze(out), a


def _reference(x, masks, wq, bq):
    B, L, D = x.shape
    H = wq.shape[1]
    q = (x @ wq + bq).transpose(0, 2, 1)                      # (B, H, L)
    m = jnp.asarray(masks, jnp.float32)
    if m.ndim == 2:
        m = m[:, None, :]
    m = jnp.broadcast_to(m, (B, H, L))
    e = jnp.where(m > 0.5, q, jnp.full_like(q, -9.0e15))
    a = jax.nn.softmax(e, axis=-1)
    out = jnp.einsum("bhl,bld->bhd", a, x).sum(axis=1)        # (B, D)
    return jnp.squeeze(out), a


if __name__ == "__main__":
    key = jax.random.PRNGKey(0)
    B, L, D, H = 2, 8, 32, 4   # batch, seq len, input_dim, n_heads

    kx, km, kw, kb = jax.random.split(key, 4)
    x = jax.random.normal(kx, (B, L, D), dtype=jnp.float32)
    # 0/1 padding-style mask over (B, L); at least one valid position per row.
    masks = (jax.random.uniform(km, (B, L)) > 0.3).astype(jnp.float32)
    masks = masks.at[:, 0].set(1.0)
    # deterministic Linear(input_dim, n_heads) parameters
    wq = jax.random.normal(kw, (D, H), dtype=jnp.float32) * 0.1
    bq = jax.random.normal(kb, (H,), dtype=jnp.float32) * 0.1

    out, a = link_attention_drug(x, masks, wq, bq)
    jax.block_until_ready((out, a))

    ref_out, ref_a = _reference(x, masks, wq, bq)
    assert jnp.allclose(out, ref_out, atol=1e-4, rtol=1e-4)
    assert jnp.allclose(a, ref_a, atol=1e-5, rtol=1e-5)

    print("KERNEL_OK")
</pallas_src>

<mosaic_0001>
module attributes {stable_mosaic.version = 11 : i64} {
  func.func @_link_attention_kernel(%arg0: i32, %arg1: memref<8x128x128xf32, #tpu.memory_space<vmem>>, %arg2: memref<8x1x128xf32, #tpu.memory_space<vmem>>, %arg3: memref<128x4xf32, #tpu.memory_space<vmem>>, %arg4: memref<1x4xf32, #tpu.memory_space<vmem>>, %arg5: memref<8x128xf32, #tpu.memory_space<vmem>>, %arg6: memref<8x4x128xf32, #tpu.memory_space<vmem>>) attributes {dimension_semantics = [#tpu.dimension_semantics<parallel>], iteration_bounds = array<i64: 1>, scalar_prefetch = 0 : i64, scratch_operands = 0 : i64, tpu.core_type = #tpu.core_type<tc>, window_params = [{transform_indices = @transform_0, window_bounds = array<i64: 8, 128, 128>}, {transform_indices = @transform_1, window_bounds = array<i64: 8, 1, 128>}, {pipeline_mode = #tpu.pipeline_mode<synchronous>, transform_indices = @transform_2, window_bounds = array<i64: 128, 4>}, {pipeline_mode = #tpu.pipeline_mode<synchronous>, transform_indices = @transform_3, window_bounds = array<i64: 1, 4>}, {transform_indices = @transform_4, window_bounds = array<i64: 8, 128>}, {transform_indices = @transform_5, window_bounds = array<i64: 8, 4, 128>}]} {
    %c0 = arith.constant 0 : index
    %c0_0 = arith.constant 0 : index
    %c0_1 = arith.constant 0 : index
    %0 = vector.load %arg1[%c0, %c0_0, %c0_1] : memref<8x128x128xf32, #tpu.memory_space<vmem>>, vector<8x128x128xf32>
    %1 = vector.shape_cast %0 : vector<8x128x128xf32> to vector<1024x128xf32>
    %c0_2 = arith.constant 0 : index
    %c0_3 = arith.constant 0 : index
    %2 = vector.load %arg3[%c0_2, %c0_3] : memref<128x4xf32, #tpu.memory_space<vmem>>, vector<128x4xf32>
    %cst = arith.constant dense<0.000000e+00> : vector<1024x4xf32>
    %3 = tpu.matmul %1, %2, %cst {dimension_numbers = #tpu.dot_dimension_numbers<[1], [0], [0], [1], [0, 0, 1, 1], [], []>} : vector<1024x128xf32>, vector<128x4xf32>, vector<1024x4xf32> -> vector<1024x4xf32>
    %c0_4 = arith.constant 0 : index
    %c0_5 = arith.constant 0 : index
    %4 = vector.load %arg4[%c0_4, %c0_5] : memref<1x4xf32, #tpu.memory_space<vmem>>, vector<1x4xf32>
    %5 = vector.broadcast %4 : vector<1x4xf32> to vector<1024x4xf32>
    %6 = arith.addf %3, %5 : vector<1024x4xf32>
    %7 = vector.shape_cast %6 : vector<1024x4xf32> to vector<8x128x4xf32>
    %8 = tpu.transpose %7, [0, 2, 1] : vector<8x128x4xf32> -> vector<8x4x128xf32>
    %c0_6 = arith.constant 0 : index
    %c0_7 = arith.constant 0 : index
    %c0_8 = arith.constant 0 : index
    %9 = vector.load %arg2[%c0_6, %c0_7, %c0_8] : memref<8x1x128xf32, #tpu.memory_space<vmem>>, vector<8x1x128xf32>
    %cst_9 = arith.constant 5.000000e-01 : f32
    %10 = vector.broadcast %cst_9 : f32 to vector<8x1x128xf32>
    %11 = arith.cmpf ogt, %9, %10 : vector<8x1x128xf32>
    %cst_10 = arith.constant -9.000000e+15 : f32
    %12 = vector.shape_cast %11 : vector<8x1x128xi1> to vector<8x1x128xi1>
    %13 = vector.broadcast %12 : vector<8x1x128xi1> to vector<8x4x128xi1>
    %14 = vector.broadcast %cst_10 : f32 to vector<8x4x128xf32>
    %15 = arith.select %13, %8, %14 : vector<8x4x128xi1>, vector<8x4x128xf32>
    %cst_11 = arith.constant dense<0xFF800000> : vector<8x4xf32>
    %16 = vector.multi_reduction <maximumf>, %15, %cst_11 [2] : vector<8x4x128xf32> to vector<8x4xf32>
    %17 = vector.shape_cast %16 : vector<8x4xf32> to vector<8x4x1xf32>
    %18 = vector.broadcast %17 : vector<8x4x1xf32> to vector<8x4x128xf32>
    %19 = arith.subf %15, %18 : vector<8x4x128xf32>
    %20 = math.exp %19 : vector<8x4x128xf32>
    %21 = tpu.iota {dimensions = array<i32: 2>} : vector<8x4x128xi32>
    %c8_i32 = arith.constant 8 : i32
    %22 = vector.broadcast %c8_i32 : i32 to vector<8x4x128xi32>
    %23 = arith.cmpi slt, %21, %22 : vector<8x4x128xi32>
    %cst_12 = arith.constant 0.000000e+00 : f32
    %24 = vector.broadcast %cst_12 : f32 to vector<8x4x128xf32>
    %25 = arith.select %23, %20, %24 : vector<8x4x128xi1>, vector<8x4x128xf32>
    %cst_13 = arith.constant dense<0.000000e+00> : vector<8x4xf32>
    %26 = vector.multi_reduction <add>, %25, %cst_13 [2] : vector<8x4x128xf32> to vector<8x4xf32>
    %27 = vector.shape_cast %26 : vector<8x4xf32> to vector<8x4x1xf32>
    %28 = tpu.reciprocal %27 {approx = true} : vector<8x4x1xf32> -> vector<8x4x1xf32>
    %29 = arith.mulf %27, %28 : vector<8x4x1xf32>
    %cst_14 = arith.constant 2.000000e+00 : f32
    %30 = vector.broadcast %cst_14 : f32 to vector<8x4x1xf32>
    %31 = arith.subf %30, %29 : vector<8x4x1xf32>
    %32 = arith.mulf %28, %31 : vector<8x4x1xf32>
    %33 = vector.broadcast %32 : vector<8x4x1xf32> to vector<8x4x128xf32>
    %34 = arith.mulf %25, %33 : vector<8x4x128xf32>
    %c0_15 = arith.constant 0 : index
    %c0_16 = arith.constant 0 : index
    %c0_17 = arith.constant 0 : index
    %35 = vector.load %arg6[%c0_15, %c0_16, %c0_17] : memref<8x4x128xf32, #tpu.memory_space<vmem>>, vector<8x4x128xf32>
    tpu.vector_store %arg6[%c0_15, %c0_16, %c0_17], %34 {strides = array<i32>} : memref<8x4x128xf32, #tpu.memory_space<vmem>>, vector<8x4x128xf32>,
    %cst_18 = arith.constant dense<0.000000e+00> : vector<8x128xf32>
    %36 = vector.multi_reduction <add>, %34, %cst_18 [1] : vector<8x4x128xf32> to vector<8x128xf32>
    %37 = vector.shape_cast %36 : vector<8x128xf32> to vector<8x128x1xf32>
    %38 = vector.broadcast %37 : vector<8x128x1xf32> to vector<8x128x128xf32>
    %39 = arith.mulf %38, %0 : vector<8x128x128xf32>
    %cst_19 = arith.constant dense<0.000000e+00> : vector<8x128xf32>
    %40 = vector.multi_reduction <add>, %39, %cst_19 [1] : vector<8x128x128xf32> to vector<8x128xf32>
    %c0_20 = arith.constant 0 : index
    %c0_21 = arith.constant 0 : index
    %41 = vector.load %arg5[%c0_20, %c0_21] : memref<8x128xf32, #tpu.memory_space<vmem>>, vector<8x128xf32>
    tpu.vector_store %arg5[%c0_20, %c0_21], %40 {strides = array<i32>} : memref<8x128xf32, #tpu.memory_space<vmem>>, vector<8x128xf32>,
    return
  }
  func.func @transform_0(%arg0: i32) -> (i32, i32, i32) {
    %c0_i32 = arith.constant 0 : i32
    %c0_i32_0 = arith.constant 0 : i32
    %c0_i32_1 = arith.constant 0 : i32
    return %arg0, %c0_i32, %c0_i32_0 : i32, i32, i32
  }
  func.func @transform_1(%arg0: i32) -> (i32, i32, i32) {
    %c0_i32 = arith.constant 0 : i32
    %c0_i32_0 = arith.constant 0 : i32
    %c0_i32_1 = arith.constant 0 : i32
    return %arg0, %c0_i32, %c0_i32_0 : i32, i32, i32
  }
  func.func @transform_2(%arg0: i32) -> (i32, i32) {
    %c0_i32 = arith.constant 0 : i32
    %c0_i32_0 = arith.constant 0 : i32
    %c0_i32_1 = arith.constant 0 : i32
    return %c0_i32, %c0_i32_0 : i32, i32
  }
  func.func @transform_3(%arg0: i32) -> (i32, i32) {
    %c0_i32 = arith.constant 0 : i32
    %c0_i32_0 = arith.constant 0 : i32
    %c0_i32_1 = arith.constant 0 : i32
    return %c0_i32, %c0_i32_0 : i32, i32
  }
  func.func @transform_4(%arg0: i32) -> (i32, i32) {
    %c0_i32 = arith.constant 0 : i32
    %c0_i32_0 = arith.constant 0 : i32
    return %arg0, %c0_i32 : i32, i32
  }
  func.func @transform_5(%arg0: i32) -> (i32, i32, i32) {
    %c0_i32 = arith.constant 0 : i32
    %c0_i32_0 = arith.constant 0 : i32
    %c0_i32_1 = arith.constant 0 : i32
    return %arg0, %c0_i32, %c0_i32_0 : i32, i32, i32
  }
}

</mosaic_0001>

<llo_original>
// kernel: tpu_custom_call.1
$region0: #{tpu_custom_call.1}
  #allocation0 [shape = 'u32[]', space=smem, size = 0x4, offset = 0x4, fixed_abs, tag = 'smem constant byte address 0x4 - core index']
  #allocation1 [shape = 'u32[144,128]{1,0:T(1,128)}', space=vmem, size = 0x12000, scoped, tag = 'internal scratch']
  %s0 = inlined_call_operand.hbm [shape: f32[8,128,128], index: 0, kind: input, shape index: {}]
  %s1 = inlined_call_operand.vmem [shape: f32[8,1,128], index: 1, kind: input, shape index: {}]
  %s2 = inlined_call_operand.vmem [shape: f32[128,4], index: 2, kind: input, shape index: {}]
  %s3 = inlined_call_operand.vmem [shape: f32[1,4], index: 3, kind: input, shape index: {}]
  %s4 = inlined_call_operand.hbm [shape: f32[8,128], index: 4, kind: output, shape index: {0}]
  %s5 = inlined_call_operand.hbm [shape: f32[8,4,128], index: 5, kind: output, shape index: {1}]
  %6 = xla_tuple %s4, %s5
  %s7 = sld [smem:[#allocation0]]
  $region38: #{tpu_custom_call.1} parent=0
    _
  %s9 = ssub.s32 1, %s7
  %s10 = scalar_select 0, %s9, %s7
  $region1: #{tpu_custom_call.1} parent=0
    #allocation2 [shape = 'u8[524288]{0}', space=vmem, size = 0x80000, scoped, tag = 'input window, operand 0, single buffered']
    #allocation3 [shape = 's32[1]{0}', space=sflag, size = 0x4, scoped, tag = 'scoped memory for tpu_custom_call.1']
    #allocation4 [shape = 's32[1]{0}', space=sflag, size = 0x4, scoped, tag = 'scoped memory for tpu_custom_call.1']
    #allocation5 [shape = 'u8[4096]{0}', space=vmem, size = 0x1000, scoped, tag = 'output window, operand 0, single buffered']
    #allocation6 [shape = 'u8[16384]{0}', space=vmem, size = 0x4000, scoped, tag = 'output window, operand 1, single buffered']
    #allocation7 [shape = 's32[1]{0}', space=sflag, size = 0x4, scoped, tag = 'scoped memory for tpu_custom_call.1']
    %11 = vsyncpa [#allocation3], 0
    %12 = vsyncpa [#allocation4], 0
    %13 = vsyncpa [#allocation7], 0
    // Predicated region
    $region2: #{tpu_custom_call.1} parent=1 // pred_check
      _
    $region3: #{tpu_custom_call.1} parent=1 // pred_check_branch
      %15 = sbr.rel (0) target = $region5
    $region4: #{tpu_custom_call.1} parent=1 // pred_region
      %s17 = ssub.s32 16384, 16384
      %18 = vsyncadd [#allocation3], %s17
      %s19 = sshll.u32 [#allocation2], 4
      %s20 = int_to_ptr.vmem [resolvable:$true] %s19
      %25 = dma.hbm_to_vmem [thread:$0]  %s0, 16384, %s20, [#allocation3], 128, 128, 8
    $region5: #{tpu_custom_call.1} parent=1 // pred_fallthru
      _
    // Predicated region
    $region6: #{tpu_custom_call.1} parent=1 // pred_check
      _
    $region7: #{tpu_custom_call.1} parent=1 // pred_check_branch
      %27 = sbr.rel (0) target = $region9
    $region8: #{tpu_custom_call.1} parent=1 // pred_region
      _
    $region9: #{tpu_custom_call.1} parent=1 // pred_fallthru
      _
    // Predicated region
    $region10: #{tpu_custom_call.1} parent=1 // pred_check
      _
    $region11: #{tpu_custom_call.1} parent=1 // pred_check_branch
      %29 = sbr.rel (0) target = $region13
    $region12: #{tpu_custom_call.1} parent=1 // pred_region
      _
    $region13: #{tpu_custom_call.1} parent=1 // pred_fallthru
      _
    // Predicated region
    $region14: #{tpu_custom_call.1} parent=1 // pred_check
      _
    $region15: #{tpu_custom_call.1} parent=1 // pred_check_branch
      %31 = sbr.rel (0) target = $region17
    $region16: #{tpu_custom_call.1} parent=1 // pred_region
      _
    $region17: #{tpu_custom_call.1} parent=1 // pred_fallthru
      _
    // Predicated region
    $region18: #{tpu_custom_call.1} parent=1 // pred_check
      _
    $region19: #{tpu_custom_call.1} parent=1 // pred_check_branch
      %33 = sbr.rel (0) target = $region21
    $region20: #{tpu_custom_call.1} parent=1 // pred_region
      %34 = dma.done [#allocation3], 16384
    $region21: #{tpu_custom_call.1} parent=1 // pred_fallthru
      _
    %v35 = vld [vmem:[#allocation2] sm:$0xff]
    %v36 = vld [vmem:[#allocation2 + $0x8] sm:$0xff]
    %v37 = vld [vmem:[#allocation2 + $0x10] sm:$0xff]
    %v38 = vld [vmem:[#allocation2 + $0x18] sm:$0xff]
    %v39 = vld [vmem:[#allocation2 + $0x20] sm:$0xff]
    %v40 = vld [vmem:[#allocation2 + $0x28] sm:$0xff]
    %v41 = vld [vmem:[#allocation2 + $0x30] sm:$0xff]
    %v42 = vld [vmem:[#allocation2 + $0x38] sm:$0xff]
    %v43 = vld [vmem:[#allocation2 + $0x40] sm:$0xff]
    %v44 = vld [vmem:[#allocation2 + $0x48] sm:$0xff]
    %v45 = vld [vmem:[#allocation2 + $0x50] sm:$0xff]
    %v46 = vld [vmem:[#allocation2 + $0x58] sm:$0xff]
    %v47 = vld [vmem:[#allocation2 + $0x60] sm:$0xff]
    %v48 = vld [vmem:[#allocation2 + $0x68] sm:$0xff]
    %v49 = vld [vmem:[#allocation2 + $0x70] sm:$0xff]
    %v50 = vld [vmem:[#allocation2 + $0x78] sm:$0xff]
    %v51 = vld [vmem:[#allocation2 + $0x80] sm:$0xff]
    %v52 = vld [vmem:[#allocation2 + $0x88] sm:$0xff]
    %v53 = vld [vmem:[#allocation2 + $0x90] sm:$0xff]
    %v54 = vld [vmem:[#allocation2 + $0x98] sm:$0xff]
    %v55 = vld [vmem:[#allocation2 + $0xa0] sm:$0xff]
    %v56 = vld [vmem:[#allocation2 + $0xa8] sm:$0xff]
    %v57 = vld [vmem:[#allocation2 + $0xb0] sm:$0xff]
    %v58 = vld [vmem:[#allocation2 + $0xb8] sm:$0xff]
    %v59 = vld [vmem:[#allocation2 + $0xc0] sm:$0xff]
    %v60 = vld [vmem:[#allocation2 + $0xc8] sm:$0xff]
    %v61 = vld [vmem:[#allocation2 + $0xd0] sm:$0xff]
    %v62 = vld [vmem:[#allocation2 + $0xd8] sm:$0xff]
    %v63 = vld [vmem:[#allocation2 + $0xe0] sm:$0xff]
    %v64 = vld [vmem:[#allocation2 + $0xe8] sm:$0xff]
    %v65 = vld [vmem:[#allocation2 + $0xf0] sm:$0xff]
    %v66 = vld [vmem:[#allocation2 + $0xf8] sm:$0xff]
    %v67 = vld [vmem:[#allocation2 + $0x100] sm:$0xff]
    %v68 = vld [vmem:[#allocation2 + $0x108] sm:$0xff]
    %v69 = vld [vmem:[#allocation2 + $0x110] sm:$0xff]
    %v70 = vld [vmem:[#allocation2 + $0x118] sm:$0xff]
    %v71 = vld [vmem:[#allocation2 + $0x120] sm:$0xff]
    %v72 = vld [vmem:[#allocation2 + $0x128] sm:$0xff]
    %v73 = vld [vmem:[#allocation2 + $0x130] sm:$0xff]
    %v74 = vld [vmem:[#allocation2 + $0x138] sm:$0xff]
    %v75 = vld [vmem:[#allocation2 + $0x140] sm:$0xff]
    %v76 = vld [vmem:[#allocation2 + $0x148] sm:$0xff]
    %v77 = vld [vmem:[#allocation2 + $0x150] sm:$0xff]
    %v78 = vld [vmem:[#allocation2 + $0x158] sm:$0xff]
    %v79 = vld [vmem:[#allocation2 + $0x160] sm:$0xff]
    %v80 = vld [vmem:[#allocation2 + $0x168] sm:$0xff]
    %v81 = vld [vmem:[#allocation2 + $0x170] sm:$0xff]
    %v82 = vld [vmem:[#allocation2 + $0x178] sm:$0xff]
    %v83 = vld [vmem:[#allocation2 + $0x180] sm:$0xff]
    %v84 = vld [vmem:[#allocation2 + $0x188] sm:$0xff]
    %v85 = vld [vmem:[#allocation2 + $0x190] sm:$0xff]
    %v86 = vld [vmem:[#allocation2 + $0x198] sm:$0xff]
    %v87 = vld [vmem:[#allocation2 + $0x1a0] sm:$0xff]
    %v88 = vld [vmem:[#allocation2 + $0x1a8] sm:$0xff]
    %v89 = vld [vmem:[#allocation2 + $0x1b0] sm:$0xff]
    %v90 = vld [vmem:[#allocation2 + $0x1b8] sm:$0xff]
    %v91 = vld [vmem:[#allocation2 + $0x1c0] sm:$0xff]
    %v92 = vld [vmem:[#allocation2 + $0x1c8] sm:$0xff]
    %v93 = vld [vmem:[#allocation2 + $0x1d0] sm:$0xff]
    %v94 = vld [vmem:[#allocation2 + $0x1d8] sm:$0xff]
    %v95 = vld [vmem:[#allocation2 + $0x1e0] sm:$0xff]
    %v96 = vld [vmem:[#allocation2 + $0x1e8] sm:$0xff]
    %v97 = vld [vmem:[#allocation2 + $0x1f0] sm:$0xff]
    %v98 = vld [vmem:[#allocation2 + $0x1f8] sm:$0xff]
    %v99 = vld [vmem:[#allocation2 + $0x200] sm:$0xff]
    %v100 = vld [vmem:[#allocation2 + $0x208] sm:$0xff]
    %v101 = vld [vmem:[#allocation2 + $0x210] sm:$0xff]
    %v102 = vld [vmem:[#allocation2 + $0x218] sm:$0xff]
    %v103 = vld [vmem:[#allocation2 + $0x220] sm:$0xff]
    %v104 = vld [vmem:[#allocation2 + $0x228] sm:$0xff]
    %v105 = vld [vmem:[#allocation2 + $0x230] sm:$0xff]
    %v106 = vld [vmem:[#allocation2 + $0x238] sm:$0xff]
    %v107 = vld [vmem:[#allocation2 + $0x240] sm:$0xff]
    %v108 = vld [vmem:[#allocation2 + $0x248] sm:$0xff]
    %v109 = vld [vmem:[#allocation2 + $0x250] sm:$0xff]
    %v110 = vld [vmem:[#allocation2 + $0x258] sm:$0xff]
    %v111 = vld [vmem:[#allocation2 + $0x260] sm:$0xff]
    %v112 = vld [vmem:[#allocation2 + $0x268] sm:$0xff]
    %v113 = vld [vmem:[#allocation2 + $0x270] sm:$0xff]
    %v114 = vld [vmem:[#allocation2 + $0x278] sm:$0xff]
    %v115 = vld [vmem:[#allocation2 + $0x280] sm:$0xff]
    %v116 = vld [vmem:[#allocation2 + $0x288] sm:$0xff]
    %v117 = vld [vmem:[#allocation2 + $0x290] sm:$0xff]
    %v118 = vld [vmem:[#allocation2 + $0x298] sm:$0xff]
    %v119 = vld [vmem:[#allocation2 + $0x2a0] sm:$0xff]
    %v120 = vld [vmem:[#allocation2 + $0x2a8] sm:$0xff]
    %v121 = vld [vmem:[#allocation2 + $0x2b0] sm:$0xff]
    %v122 = vld [vmem:[#allocation2 + $0x2b8] sm:$0xff]
    %v123 = vld [vmem:[#allocation2 + $0x2c0] sm:$0xff]
    %v124 = vld [vmem:[#allocation2 + $0x2c8] sm:$0xff]
    %v125 = vld [vmem:[#allocation2 + $0x2d0] sm:$0xff]
    %v126 = vld [vmem:[#allocation2 + $0x2d8] sm:$0xff]
    %v127 = vld [vmem:[#allocation2 + $0x2e0] sm:$0xff]
    %v128 = vld [vmem:[#allocation2 + $0x2e8] sm:$0xff]
    %v129 = vld [vmem:[#allocation2 + $0x2f0] sm:$0xff]
    %v130 = vld [vmem:[#allocation2 + $0x2f8] sm:$0xff]
    %v131 = vld [vmem:[#allocation2 + $0x300] sm:$0xff]
    %v132 = vld [vmem:[#allocation2 + $0x308] sm:$0xff]
    %v133 = vld [vmem:[#allocation2 + $0x310] sm:$0xff]
    %v134 = vld [vmem:[#allocation2 + $0x318] sm:$0xff]
    %v135 = vld [vmem:[#allocation2 + $0x320] sm:$0xff]
    %v136 = vld [vmem:[#allocation2 + $0x328] sm:$0xff]
    %v137 = vld [vmem:[#allocation2 + $0x330] sm:$0xff]
    %v138 = vld [vmem:[#allocation2 + $0x338] sm:$0xff]
    %v139 = vld [vmem:[#allocation2 + $0x340] sm:$0xff]
    %v140 = vld [vmem:[#allocation2 + $0x348] sm:$0xff]
    %v141 = vld [vmem:[#allocation2 + $0x350] sm:$0xff]
    %v142 = vld [vmem:[#allocation2 + $0x358] sm:$0xff]
    %v143 = vld [vmem:[#allocation2 + $0x360] sm:$0xff]
    %v144 = vld [vmem:[#allocation2 + $0x368] sm:$0xff]
    %v145 = vld [vmem:[#allocation2 + $0x370] sm:$0xff]
    %v146 = vld [vmem:[#allocation2 + $0x378] sm:$0xff]
    %v147 = vld [vmem:[#allocation2 + $0x380] sm:$0xff]
    %v148 = vld [vmem:[#allocation2 + $0x388] sm:$0xff]
    %v149 = vld [vmem:[#allocation2 + $0x390] sm:$0xff]
    %v150 = vld [vmem:[#allocation2 + $0x398] sm:$0xff]
    %v151 = vld [vmem:[#allocation2 + $0x3a0] sm:$0xff]
    %v152 = vld [vmem:[#allocation2 + $0x3a8] sm:$0xff]
    %v153 = vld [vmem:[#allocation2 + $0x3b0] sm:$0xff]
    %v154 = vld [vmem:[#allocation2 + $0x3b8] sm:$0xff]
    %v155 = vld [vmem:[#allocation2 + $0x3c0] sm:$0xff]
    %v156 = vld [vmem:[#allocation2 + $0x3c8] sm:$0xff]
    %v157 = vld [vmem:[#allocation2 + $0x3d0] sm:$0xff]
    %v158 = vld [vmem:[#allocation2 + $0x3d8] sm:$0xff]
    %v159 = vld [vmem:[#allocation2 + $0x3e0] sm:$0xff]
    %v160 = vld [vmem:[#allocation2 + $0x3e8] sm:$0xff]
    %v161 = vld [vmem:[#allocation2 + $0x3f0] sm:$0xff]
    %v162 = vld [vmem:[#allocation2 + $0x3f8] sm:$0xff]
    %v163 = vld [vmem:[%s2] sm:$0xff]
    %v164 = vld [vmem:[%s2 + $0x8] sm:$0xff]
    %v165 = vld [vmem:[%s2 + $0x10] sm:$0xff]
    %v166 = vld [vmem:[%s2 + $0x18] sm:$0xff]
    %v167 = vld [vmem:[%s2 + $0x20] sm:$0xff]
    %v168 = vld [vmem:[%s2 + $0x28] sm:$0xff]
    %v169 = vld [vmem:[%s2 + $0x30] sm:$0xff]
    %v170 = vld [vmem:[%s2 + $0x38] sm:$0xff]
    %v171 = vld [vmem:[%s2 + $0x40] sm:$0xff]
    %v172 = vld [vmem:[%s2 + $0x48] sm:$0xff]
    %v173 = vld [vmem:[%s2 + $0x50] sm:$0xff]
    %v174 = vld [vmem:[%s2 + $0x58] sm:$0xff]
    %v175 = vld [vmem:[%s2 + $0x60] sm:$0xff]
    %v176 = vld [vmem:[%s2 + $0x68] sm:$0xff]
    %v177 = vld [vmem:[%s2 + $0x70] sm:$0xff]
    %v178 = vld [vmem:[%s2 + $0x78] sm:$0xff]
    %v179 = vld [vmem:[%s3] sm:$0x1]
    %v181 = vlaneseq
    %v182 = vshrl.u32 %v181, 7
    %v183 = vsub.s32 0, %v182
    %v184 = vrot.slane %v179, %v183
    %186 = vmatprep.subr.mxu0 0.0
    %187 = vmatpush1.msra.mxu0 %v178
    %188 = vmatprep.subr.mxu0 0.0
    %189 = vmatpush1.msra.mxu0 %v177
    %190 = vmatprep.subr.mxu0 0.0
    %191 = vmatpush1.msra.mxu0 %v176
    %192 = vmatprep.subr.mxu0 0.0
    %193 = vmatpush1.msra.mxu0 %v175
    %194 = vmatprep.subr.mxu0 0.0
    %195 = vmatpush1.msra.mxu0 %v174
    %196 = vmatprep.subr.mxu0 0.0
    %197 = vmatpush1.msra.mxu0 %v173
    %198 = vmatprep.subr.mxu0 0.0
    %199 = vmatpush1.msra.mxu0 %v172
    %200 = vmatprep.subr.mxu0 0.0
    %201 = vmatpush1.msra.mxu0 %v171
    %202 = vmatprep.subr.mxu0 0.0
    %203 = vmatpush1.msra.mxu0 %v170
    %204 = vmatprep.subr.mxu0 0.0
    %205 = vmatpush1.msra.mxu0 %v169
    %206 = vmatprep.subr.mxu0 0.0
    %207 = vmatpush1.msra.mxu0 %v168
    %208 = vmatprep.subr.mxu0 0.0
    %209 = vmatpush1.msra.mxu0 %v167
    %210 = vmatprep.subr.mxu0 0.0
    %211 = vmatpush1.msra.mxu0 %v166
    %212 = vmatprep.subr.mxu0 0.0
    %213 = vmatpush1.msra.mxu0 %v165
    %214 = vmatprep.subr.mxu0 0.0
    %215 = vmatpush1.msra.mxu0 %v164
    %216 = vmatprep.subr.mxu0 0.0
    %217 = vmatpush1.msra.mxu0 %v163
    %218 = vmatprep.subr.mxu0 0.0
    %219 = vmatpush2.msra.mxu0 0.0
    %220 = vmatprep.subr.mxu0 0.0
    %221 = vmatpush2.msra.mxu0 0.0
    %222 = vmatprep.subr.mxu0 0.0
    %223 = vmatpush2.msra.mxu0 0.0
    %224 = vmatprep.subr.mxu0 0.0
    %225 = vmatpush2.msra.mxu0 0.0
    %226 = vmatprep.subr.mxu0 0.0
    %227 = vmatpush2.msra.mxu0 0.0
    %228 = vmatprep.subr.mxu0 0.0
    %229 = vmatpush2.msra.mxu0 0.0
    %230 = vmatprep.subr.mxu0 0.0
    %231 = vmatpush2.msra.mxu0 0.0
    %232 = vmatprep.subr.mxu0 0.0
    %233 = vmatpush2.msra.mxu0 0.0
    %234 = vmatprep.subr.mxu0 0.0
    %235 = vmatpush2.msra.mxu0 0.0
    %236 = vmatprep.subr.mxu0 0.0
    %237 = vmatpush2.msra.mxu0 0.0
    %238 = vmatprep.subr.mxu0 0.0
    %239 = vmatpush2.msra.mxu0 0.0
    %240 = vmatprep.subr.mxu0 0.0
    %241 = vmatpush2.msra.mxu0 0.0
    %242 = vmatprep.subr.mxu0 0.0
    %243 = vmatpush2.msra.mxu0 0.0
    %244 = vmatprep.subr.mxu0 0.0
    %245 = vmatpush2.msra.mxu0 0.0
    %246 = vmatprep.subr.mxu0 0.0
    %247 = vmatpush2.msra.mxu0 0.0
    %248 = vmatprep.subr.mxu0 0.0
    %249 = vmatpush2.msra.mxu0 0.0
    %250 = vmatprep.mubr.f32.mxu0 0.0
    %251 = vmatmul.mubr.f32.gmra.mxu0 %v35
    %v252 = vpop.f32.mrf.mxu0
    %v253 = vadd.f32 %v184, %v252
    %v254 = vpop.f32.mrf.mxu0
    %255 = vmatprep.mubr.f32.mxu0 0.0
    %256 = vmatmul.mubr.f32.gmra.mxu0 %v36
    %v257 = vpop.f32.mrf.mxu0
    %v258 = vadd.f32 %v184, %v257
    %v259 = vpop.f32.mrf.mxu0
    %260 = vmatprep.mubr.f32.mxu0 0.0
    %261 = vmatmul.mubr.f32.gmra.mxu0 %v37
    %v262 = vpop.f32.mrf.mxu0
    %v263 = vadd.f32 %v184, %v262
    %v264 = vpop.f32.mrf.mxu0
    %265 = vmatprep.mubr.f32.mxu0 0.0
    %266 = vmatmul.mubr.f32.gmra.mxu0 %v38
    %v267 = vpop.f32.mrf.mxu0
    %v268 = vadd.f32 %v184, %v267
    %v269 = vpop.f32.mrf.mxu0
    %270 = vmatprep.mubr.f32.mxu0 0.0
    %271 = vmatmul.mubr.f32.gmra.mxu0 %v39
    %v272 = vpop.f32.mrf.mxu0
    %v273 = vadd.f32 %v184, %v272
    %v274 = vpop.f32.mrf.mxu0
    %275 = vmatprep.mubr.f32.mxu0 0.0
    %276 = vmatmul.mubr.f32.gmra.mxu0 %v40
    %v277 = vpop.f32.mrf.mxu0
    %v278 = vadd.f32 %v184, %v277
    %v279 = vpop.f32.mrf.mxu0
    %280 = vmatprep.mubr.f32.mxu0 0.0
    %281 = vmatmul.mubr.f32.gmra.mxu0 %v41
    %v282 = vpop.f32.mrf.mxu0
    %v283 = vadd.f32 %v184, %v282
    %v284 = vpop.f32.mrf.mxu0
    %285 = vmatprep.mubr.f32.mxu0 0.0
    %286 = vmatmul.mubr.f32.gmra.mxu0 %v42
    %v287 = vpop.f32.mrf.mxu0
    %v288 = vadd.f32 %v184, %v287
    %v289 = vpop.f32.mrf.mxu0
    %290 = vmatprep.mubr.f32.mxu0 0.0
    %291 = vmatmul.mubr.f32.gmra.mxu0 %v43
    %v292 = vpop.f32.mrf.mxu0
    %v293 = vadd.f32 %v184, %v292
    %v294 = vpop.f32.mrf.mxu0
    %295 = vmatprep.mubr.f32.mxu0 0.0
    %296 = vmatmul.mubr.f32.gmra.mxu0 %v44
    %v297 = vpop.f32.mrf.mxu0
    %v298 = vadd.f32 %v184, %v297
    %v299 = vpop.f32.mrf.mxu0
    %300 = vmatprep.mubr.f32.mxu0 0.0
    %301 = vmatmul.mubr.f32.gmra.mxu0 %v45
    %v302 = vpop.f32.mrf.mxu0
    %v303 = vadd.f32 %v184, %v302
    %v304 = vpop.f32.mrf.mxu0
    %305 = vmatprep.mubr.f32.mxu0 0.0
    %306 = vmatmul.mubr.f32.gmra.mxu0 %v46
    %v307 = vpop.f32.mrf.mxu0
    %v308 = vadd.f32 %v184, %v307
    %v309 = vpop.f32.mrf.mxu0
    %310 = vmatprep.mubr.f32.mxu0 0.0
    %311 = vmatmul.mubr.f32.gmra.mxu0 %v47
    %v312 = vpop.f32.mrf.mxu0
    %v313 = vadd.f32 %v184, %v312
    %v314 = vpop.f32.mrf.mxu0
    %315 = vmatprep.mubr.f32.mxu0 0.0
    %316 = vmatmul.mubr.f32.gmra.mxu0 %v48
    %v317 = vpop.f32.mrf.mxu0
    %v318 = vadd.f32 %v184, %v317
    %v319 = vpop.f32.mrf.mxu0
    %320 = vmatprep.mubr.f32.mxu0 0.0
    %321 = vmatmul.mubr.f32.gmra.mxu0 %v49
    %v322 = vpop.f32.mrf.mxu0
    %v323 = vadd.f32 %v184, %v322
    %v324 = vpop.f32.mrf.mxu0
    %325 = vmatprep.mubr.f32.mxu0 0.0
    %326 = vmatmul.mubr.f32.gmra.mxu0 %v50
    %v327 = vpop.f32.mrf.mxu0
    %v328 = vadd.f32 %v184, %v327
    %v329 = vpop.f32.mrf.mxu0
    %330 = vmatprep.mubr.f32.mxu0 0.0
    %331 = vmatmul.mubr.f32.gmra.mxu0 %v51
    %v332 = vpop.f32.mrf.mxu0
    %v333 = vadd.f32 %v184, %v332
    %v334 = vpop.f32.mrf.mxu0
    %335 = vmatprep.mubr.f32.mxu0 0.0
    %336 = vmatmul.mubr.f32.gmra.mxu0 %v52
    %v337 = vpop.f32.mrf.mxu0
    %v338 = vadd.f32 %v184, %v337
    %v339 = vpop.f32.mrf.mxu0
    %340 = vmatprep.mubr.f32.mxu0 0.0
    %341 = vmatmul.mubr.f32.gmra.mxu0 %v53
    %v342 = vpop.f32.mrf.mxu0
    %v343 = vadd.f32 %v184, %v342
    %v344 = vpop.f32.mrf.mxu0
    %345 = vmatprep.mubr.f32.mxu0 0.0
    %346 = vmatmul.mubr.f32.gmra.mxu0 %v54
    %v347 = vpop.f32.mrf.mxu0
    %v348 = vadd.f32 %v184, %v347
    %v349 = vpop.f32.mrf.mxu0
    %350 = vmatprep.mubr.f32.mxu0 0.0
    %351 = vmatmul.mubr.f32.gmra.mxu0 %v55
    %v352 = vpop.f32.mrf.mxu0
    %v353 = vadd.f32 %v184, %v352
    %v354 = vpop.f32.mrf.mxu0
    %355 = vmatprep.mubr.f32.mxu0 0.0
    %356 = vmatmul.mubr.f32.gmra.mxu0 %v56
    %v357 = vpop.f32.mrf.mxu0
    %v358 = vadd.f32 %v184, %v357
    %v359 = vpop.f32.mrf.mxu0
    %360 = vmatprep.mubr.f32.mxu0 0.0
    %361 = vmatmul.mubr.f32.gmra.mxu0 %v57
    %v362 = vpop.f32.mrf.mxu0
    %v363 = vadd.f32 %v184, %v362
    %v364 = vpop.f32.mrf.mxu0
    %365 = vmatprep.mubr.f32.mxu0 0.0
    %366 = vmatmul.mubr.f32.gmra.mxu0 %v58
    %v367 = vpop.f32.mrf.mxu0
    %v368 = vadd.f32 %v184, %v367
    %v369 = vpop.f32.mrf.mxu0
    %370 = vmatprep.mubr.f32.mxu0 0.0
    %371 = vmatmul.mubr.f32.gmra.mxu0 %v59
    %v372 = vpop.f32.mrf.mxu0
    %v373 = vadd.f32 %v184, %v372
    %v374 = vpop.f32.mrf.mxu0
    %375 = vmatprep.mubr.f32.mxu0 0.0
    %376 = vmatmul.mubr.f32.gmra.mxu0 %v60
    %v377 = vpop.f32.mrf.mxu0
    %v378 = vadd.f32 %v184, %v377
    %v379 = vpop.f32.mrf.mxu0
    %380 = vmatprep.mubr.f32.mxu0 0.0
    %381 = vmatmul.mubr.f32.gmra.mxu0 %v61
    %v382 = vpop.f32.mrf.mxu0
    %v383 = vadd.f32 %v184, %v382
    %v384 = vpop.f32.mrf.mxu0
    %385 = vmatprep.mubr.f32.mxu0 0.0
    %386 = vmatmul.mubr.f32.gmra.mxu0 %v62
    %v387 = vpop.f32.mrf.mxu0
    %v388 = vadd.f32 %v184, %v387
    %v389 = vpop.f32.mrf.mxu0
    %390 = vmatprep.mubr.f32.mxu0 0.0
    %391 = vmatmul.mubr.f32.gmra.mxu0 %v63
    %v392 = vpop.f32.mrf.mxu0
    %v393 = vadd.f32 %v184, %v392
    %v394 = vpop.f32.mrf.mxu0
    %395 = vmatprep.mubr.f32.mxu0 0.0
    %396 = vmatmul.mubr.f32.gmra.mxu0 %v64
    %v397 = vpop.f32.mrf.mxu0
    %v398 = vadd.f32 %v184, %v397
    %v399 = vpop.f32.mrf.mxu0
    %400 = vmatprep.mubr.f32.mxu0 0.0
    %401 = vmatmul.mubr.f32.gmra.mxu0 %v65
    %v402 = vpop.f32.mrf.mxu0
    %v403 = vadd.f32 %v184, %v402
    %v404 = vpop.f32.mrf.mxu0
    %405 = vmatprep.mubr.f32.mxu0 0.0
    %406 = vmatmul.mubr.f32.gmra.mxu0 %v66
    %v407 = vpop.f32.mrf.mxu0
    %v408 = vadd.f32 %v184, %v407
    %v409 = vpop.f32.mrf.mxu0
    %410 = vmatprep.mubr.f32.mxu0 0.0
    %411 = vmatmul.mubr.f32.gmra.mxu0 %v67
    %v412 = vpop.f32.mrf.mxu0
    %v413 = vadd.f32 %v184, %v412
    %v414 = vpop.f32.mrf.mxu0
    %415 = vmatprep.mubr.f32.mxu0 0.0
    %416 = vmatmul.mubr.f32.gmra.mxu0 %v68
    %v417 = vpop.f32.mrf.mxu0
    %v418 = vadd.f32 %v184, %v417
    %v419 = vpop.f32.mrf.mxu0
    %420 = vmatprep.mubr.f32.mxu0 0.0
    %421 = vmatmul.mubr.f32.gmra.mxu0 %v69
    %v422 = vpop.f32.mrf.mxu0
    %v423 = vadd.f32 %v184, %v422
    %v424 = vpop.f32.mrf.mxu0
    %425 = vmatprep.mubr.f32.mxu0 0.0
    %426 = vmatmul.mubr.f32.gmra.mxu0 %v70
    %v427 = vpop.f32.mrf.mxu0
    %v428 = vadd.f32 %v184, %v427
    %v429 = vpop.f32.mrf.mxu0
    %430 = vmatprep.mubr.f32.mxu0 0.0
    %431 = vmatmul.mubr.f32.gmra.mxu0 %v71
    %v432 = vpop.f32.mrf.mxu0
    %v433 = vadd.f32 %v184, %v432
    %v434 = vpop.f32.mrf.mxu0
    %435 = vmatprep.mubr.f32.mxu0 0.0
    %436 = vmatmul.mubr.f32.gmra.mxu0 %v72
    %v437 = vpop.f32.mrf.mxu0
    %v438 = vadd.f32 %v184, %v437
    %v439 = vpop.f32.mrf.mxu0
    %440 = vmatprep.mubr.f32.mxu0 0.0
    %441 = vmatmul.mubr.f32.gmra.mxu0 %v73
    %v442 = vpop.f32.mrf.mxu0
    %v443 = vadd.f32 %v184, %v442
    %v444 = vpop.f32.mrf.mxu0
    %445 = vmatprep.mubr.f32.mxu0 0.0
    %446 = vmatmul.mubr.f32.gmra.mxu0 %v74
    %v447 = vpop.f32.mrf.mxu0
    %v448 = vadd.f32 %v184, %v447
    %v449 = vpop.f32.mrf.mxu0
    %450 = vmatprep.mubr.f32.mxu0 0.0
    %451 = vmatmul.mubr.f32.gmra.mxu0 %v75
    %v452 = vpop.f32.mrf.mxu0
    %v453 = vadd.f32 %v184, %v452
    %v454 = vpop.f32.mrf.mxu0
    %455 = vmatprep.mubr.f32.mxu0 0.0
    %456 = vmatmul.mubr.f32.gmra.mxu0 %v76
    %v457 = vpop.f32.mrf.mxu0
    %v458 = vadd.f32 %v184, %v457
    %v459 = vpop.f32.mrf.mxu0
    %460 = vmatprep.mubr.f32.mxu0 0.0
    %461 = vmatmul.mubr.f32.gmra.mxu0 %v77
    %v462 = vpop.f32.mrf.mxu0
    %v463 = vadd.f32 %v184, %v462
    %v464 = vpop.f32.mrf.mxu0
    %465 = vmatprep.mubr.f32.mxu0 0.0
    %466 = vmatmul.mubr.f32.gmra.mxu0 %v78
    %v467 = vpop.f32.mrf.mxu0
    %v468 = vadd.f32 %v184, %v467
    %v469 = vpop.f32.mrf.mxu0
    %470 = vmatprep.mubr.f32.mxu0 0.0
    %471 = vmatmul.mubr.f32.gmra.mxu0 %v79
    %v472 = vpop.f32.mrf.mxu0
    %v473 = vadd.f32 %v184, %v472
    %v474 = vpop.f32.mrf.mxu0
    %475 = vmatprep.mubr.f32.mxu0 0.0
    %476 = vmatmul.mubr.f32.gmra.mxu0 %v80
    %v477 = vpop.f32.mrf.mxu0
    %v478 = vadd.f32 %v184, %v477
    %v479 = vpop.f32.mrf.mxu0
    %480 = vmatprep.mubr.f32.mxu0 0.0
    %481 = vmatmul.mubr.f32.gmra.mxu0 %v81
    %v482 = vpop.f32.mrf.mxu0
    %v483 = vadd.f32 %v184, %v482
    %v484 = vpop.f32.mrf.mxu0
    %485 = vmatprep.mubr.f32.mxu0 0.0
    %486 = vmatmul.mubr.f32.gmra.mxu0 %v82
    %v487 = vpop.f32.mrf.mxu0
    %v488 = vadd.f32 %v184, %v487
    %v489 = vpop.f32.mrf.mxu0
    %490 = vmatprep.mubr.f32.mxu0 0.0
    %491 = vmatmul.mubr.f32.gmra.mxu0 %v83
    %v492 = vpop.f32.mrf.mxu0
    %v493 = vadd.f32 %v184, %v492
    %v494 = vpop.f32.mrf.mxu0
    %495 = vmatprep.mubr.f32.mxu0 0.0
    %496 = vmatmul.mubr.f32.gmra.mxu0 %v84
    %v497 = vpop.f32.mrf.mxu0
    %v498 = vadd.f32 %v184, %v497
    %v499 = vpop.f32.mrf.mxu0
    %500 = vmatprep.mubr.f32.mxu0 0.0
    %501 = vmatmul.mubr.f32.gmra.mxu0 %v85
    %v502 = vpop.f32.mrf.mxu0
    %v503 = vadd.f32 %v184, %v502
    %v504 = vpop.f32.mrf.mxu0
    %505 = vmatprep.mubr.f32.mxu0 0.0
    %506 = vmatmul.mubr.f32.gmra.mxu0 %v86
    %v507 = vpop.f32.mrf.mxu0
    %v508 = vadd.f32 %v184, %v507
    %v509 = vpop.f32.mrf.mxu0
    %510 = vmatprep.mubr.f32.mxu0 0.0
    %511 = vmatmul.mubr.f32.gmra.mxu0 %v87
    %v512 = vpop.f32.mrf.mxu0
    %v513 = vadd.f32 %v184, %v512
    %v514 = vpop.f32.mrf.mxu0
    %515 = vmatprep.mubr.f32.mxu0 0.0
    %516 = vmatmul.mubr.f32.gmra.mxu0 %v88
    %v517 = vpop.f32.mrf.mxu0
    %v518 = vadd.f32 %v184, %v517
    %v519 = vpop.f32.mrf.mxu0
    %520 = vmatprep.mubr.f32.mxu0 0.0
    %521 = vmatmul.mubr.f32.gmra.mxu0 %v89
    %v522 = vpop.f32.mrf.mxu0
    %v523 = vadd.f32 %v184, %v522
    %v524 = vpop.f32.mrf.mxu0
    %525 = vmatprep.mubr.f32.mxu0 0.0
    %526 = vmatmul.mubr.f32.gmra.mxu0 %v90
    %v527 = vpop.f32.mrf.mxu0
    %v528 = vadd.f32 %v184, %v527
    %v529 = vpop.f32.mrf.mxu0
    %530 = vmatprep.mubr.f32.mxu0 0.0
    %531 = vmatmul.mubr.f32.gmra.mxu0 %v91
    %v532 = vpop.f32.mrf.mxu0
    %v533 = vadd.f32 %v184, %v532
    %v534 = vpop.f32.mrf.mxu0
    %535 = vmatprep.mubr.f32.mxu0 0.0
    %536 = vmatmul.mubr.f32.gmra.mxu0 %v92
    %v537 = vpop.f32.mrf.mxu0
    %v538 = vadd.f32 %v184, %v537
    %v539 = vpop.f32.mrf.mxu0
    %540 = vmatprep.mubr.f32.mxu0 0.0
    %541 = vmatmul.mubr.f32.gmra.mxu0 %v93
    %v542 = vpop.f32.mrf.mxu0
    %v543 = vadd.f32 %v184, %v542
    %v544 = vpop.f32.mrf.mxu0
    %545 = vmatprep.mubr.f32.mxu0 0.0
    %546 = vmatmul.mubr.f32.gmra.mxu0 %v94
    %v547 = vpop.f32.mrf.mxu0
    %v548 = vadd.f32 %v184, %v547
    %v549 = vpop.f32.mrf.mxu0
    %550 = vmatprep.mubr.f32.mxu0 0.0
    %551 = vmatmul.mubr.f32.gmra.mxu0 %v95
    %v552 = vpop.f32.mrf.mxu0
    %v553 = vadd.f32 %v184, %v552
    %v554 = vpop.f32.mrf.mxu0
    %555 = vmatprep.mubr.f32.mxu0 0.0
    %556 = vmatmul.mubr.f32.gmra.mxu0 %v96
    %v557 = vpop.f32.mrf.mxu0
    %v558 = vadd.f32 %v184, %v557
    %v559 = vpop.f32.mrf.mxu0
    %560 = vmatprep.mubr.f32.mxu0 0.0
    %561 = vmatmul.mubr.f32.gmra.mxu0 %v97
    %v562 = vpop.f32.mrf.mxu0
    %v563 = vadd.f32 %v184, %v562
    %v564 = vpop.f32.mrf.mxu0
    %565 = vmatprep.mubr.f32.mxu0 0.0
    %566 = vmatmul.mubr.f32.gmra.mxu0 %v98
    %v567 = vpop.f32.mrf.mxu0
    %v568 = vadd.f32 %v184, %v567
    %v569 = vpop.f32.mrf.mxu0
    %570 = vmatprep.mubr.f32.mxu0 0.0
    %571 = vmatmul.mubr.f32.gmra.mxu0 %v99
    %v572 = vpop.f32.mrf.mxu0
    %v573 = vadd.f32 %v184, %v572
    %v574 = vpop.f32.mrf.mxu0
    %575 = vmatprep.mubr.f32.mxu0 0.0
    %576 = vmatmul.mubr.f32.gmra.mxu0 %v100
    %v577 = vpop.f32.mrf.mxu0
    %v578 = vadd.f32 %v184, %v577
    %v579 = vpop.f32.mrf.mxu0
    %580 = vmatprep.mubr.f32.mxu0 0.0
    %581 = vmatmul.mubr.f32.gmra.mxu0 %v101
    %v582 = vpop.f32.mrf.mxu0
    %v583 = vadd.f32 %v184, %v582
    %v584 = vpop.f32.mrf.mxu0
    %585 = vmatprep.mubr.f32.mxu0 0.0
    %586 = vmatmul.mubr.f32.gmra.mxu0 %v102
    %v587 = vpop.f32.mrf.mxu0
    %v588 = vadd.f32 %v184, %v587
    %v589 = vpop.f32.mrf.mxu0
    %590 = vmatprep.mubr.f32.mxu0 0.0
    %591 = vmatmul.mubr.f32.gmra.mxu0 %v103
    %v592 = vpop.f32.mrf.mxu0
    %v593 = vadd.f32 %v184, %v592
    %v594 = vpop.f32.mrf.mxu0
    %595 = vmatprep.mubr.f32.mxu0 0.0
    %596 = vmatmul.mubr.f32.gmra.mxu0 %v104
    %v597 = vpop.f32.mrf.mxu0
    %v598 = vadd.f32 %v184, %v597
    %v599 = vpop.f32.mrf.mxu0
    %600 = vmatprep.mubr.f32.mxu0 0.0
    %601 = vmatmul.mubr.f32.gmra.mxu0 %v105
    %v602 = vpop.f32.mrf.mxu0
    %v603 = vadd.f32 %v184, %v602
    %v604 = vpop.f32.mrf.mxu0
    %605 = vmatprep.mubr.f32.mxu0 0.0
    %606 = vmatmul.mubr.f32.gmra.mxu0 %v106
    %v607 = vpop.f32.mrf.mxu0
    %v608 = vadd.f32 %v184, %v607
    %v609 = vpop.f32.mrf.mxu0
    %610 = vmatprep.mubr.f32.mxu0 0.0
    %611 = vmatmul.mubr.f32.gmra.mxu0 %v107
    %v612 = vpop.f32.mrf.mxu0
    %v613 = vadd.f32 %v184, %v612
    %v614 = vpop.f32.mrf.mxu0
    %615 = vmatprep.mubr.f32.mxu0 0.0
    %616 = vmatmul.mubr.f32.gmra.mxu0 %v108
    %v617 = vpop.f32.mrf.mxu0
    %v618 = vadd.f32 %v184, %v617
    %v619 = vpop.f32.mrf.mxu0
    %620 = vmatprep.mubr.f32.mxu0 0.0
    %621 = vmatmul.mubr.f32.gmra.mxu0 %v109
    %v622 = vpop.f32.mrf.mxu0
    %v623 = vadd.f32 %v184, %v622
    %v624 = vpop.f32.mrf.mxu0
    %625 = vmatprep.mubr.f32.mxu0 0.0
    %626 = vmatmul.mubr.f32.gmra.mxu0 %v110
    %v627 = vpop.f32.mrf.mxu0
    %v628 = vadd.f32 %v184, %v627
    %v629 = vpop.f32.mrf.mxu0
    %630 = vmatprep.mubr.f32.mxu0 0.0
    %631 = vmatmul.mubr.f32.gmra.mxu0 %v111
    %v632 = vpop.f32.mrf.mxu0
    %v633 = vadd.f32 %v184, %v632
    %v634 = vpop.f32.mrf.mxu0
    %635 = vmatprep.mubr.f32.mxu0 0.0
    %636 = vmatmul.mubr.f32.gmra.mxu0 %v112
    %v637 = vpop.f32.mrf.mxu0
    %v638 = vadd.f32 %v184, %v637
    %v639 = vpop.f32.mrf.mxu0
    %640 = vmatprep.mubr.f32.mxu0 0.0
    %641 = vmatmul.mubr.f32.gmra.mxu0 %v113
    %v642 = vpop.f32.mrf.mxu0
    %v643 = vadd.f32 %v184, %v642
    %v644 = vpop.f32.mrf.mxu0
    %645 = vmatprep.mubr.f32.mxu0 0.0
    %646 = vmatmul.mubr.f32.gmra.mxu0 %v114
    %v647 = vpop.f32.mrf.mxu0
    %v648 = vadd.f32 %v184, %v647
    %v649 = vpop.f32.mrf.mxu0
    %650 = vmatprep.mubr.f32.mxu0 0.0
    %651 = vmatmul.mubr.f32.gmra.mxu0 %v115
    %v652 = vpop.f32.mrf.mxu0
    %v653 = vadd.f32 %v184, %v652
    %v654 = vpop.f32.mrf.mxu0
    %655 = vmatprep.mubr.f32.mxu0 0.0
    %656 = vmatmul.mubr.f32.gmra.mxu0 %v116
    %v657 = vpop.f32.mrf.mxu0
    %v658 = vadd.f32 %v184, %v657
    %v659 = vpop.f32.mrf.mxu0
    %660 = vmatprep.mubr.f32.mxu0 0.0
    %661 = vmatmul.mubr.f32.gmra.mxu0 %v117
    %v662 = vpop.f32.mrf.mxu0
    %v663 = vadd.f32 %v184, %v662
    %v664 = vpop.f32.mrf.mxu0
    %665 = vmatprep.mubr.f32.mxu0 0.0
    %666 = vmatmul.mubr.f32.gmra.mxu0 %v118
    %v667 = vpop.f32.mrf.mxu0
    %v668 = vadd.f32 %v184, %v667
    %v669 = vpop.f32.mrf.mxu0
    %670 = vmatprep.mubr.f32.mxu0 0.0
    %671 = vmatmul.mubr.f32.gmra.mxu0 %v119
    %v672 = vpop.f32.mrf.mxu0
    %v673 = vadd.f32 %v184, %v672
    %v674 = vpop.f32.mrf.mxu0
    %675 = vmatprep.mubr.f32.mxu0 0.0
    %676 = vmatmul.mubr.f32.gmra.mxu0 %v120
    %v677 = vpop.f32.mrf.mxu0
    %v678 = vadd.f32 %v184, %v677
    %v679 = vpop.f32.mrf.mxu0
    %680 = vmatprep.mubr.f32.mxu0 0.0
    %681 = vmatmul.mubr.f32.gmra.mxu0 %v121
    %v682 = vpop.f32.mrf.mxu0
    %v683 = vadd.f32 %v184, %v682
    %v684 = vpop.f32.mrf.mxu0
    %685 = vmatprep.mubr.f32.mxu0 0.0
    %686 = vmatmul.mubr.f32.gmra.mxu0 %v122
    %v687 = vpop.f32.mrf.mxu0
    %v688 = vadd.f32 %v184, %v687
    %v689 = vpop.f32.mrf.mxu0
    %690 = vmatprep.mubr.f32.mxu0 0.0
    %691 = vmatmul.mubr.f32.gmra.mxu0 %v123
    %v692 = vpop.f32.mrf.mxu0
    %v693 = vadd.f32 %v184, %v692
    %v694 = vpop.f32.mrf.mxu0
    %695 = vmatprep.mubr.f32.mxu0 0.0
    %696 = vmatmul.mubr.f32.gmra.mxu0 %v124
    %v697 = vpop.f32.mrf.mxu0
    %v698 = vadd.f32 %v184, %v697
    %v699 = vpop.f32.mrf.mxu0
    %700 = vmatprep.mubr.f32.mxu0 0.0
    %701 = vmatmul.mubr.f32.gmra.mxu0 %v125
    %v702 = vpop.f32.mrf.mxu0
    %v703 = vadd.f32 %v184, %v702
    %v704 = vpop.f32.mrf.mxu0
    %705 = vmatprep.mubr.f32.mxu0 0.0
    %706 = vmatmul.mubr.f32.gmra.mxu0 %v126
    %v707 = vpop.f32.mrf.mxu0
    %v708 = vadd.f32 %v184, %v707
    %v709 = vpop.f32.mrf.mxu0
    %710 = vmatprep.mubr.f32.mxu0 0.0
    %711 = vmatmul.mubr.f32.gmra.mxu0 %v127
    %v712 = vpop.f32.mrf.mxu0
    %v713 = vadd.f32 %v184, %v712
    %v714 = vpop.f32.mrf.mxu0
    %715 = vmatprep.mubr.f32.mxu0 0.0
    %716 = vmatmul.mubr.f32.gmra.mxu0 %v128
    %v717 = vpop.f32.mrf.mxu0
    %v718 = vadd.f32 %v184, %v717
    %v719 = vpop.f32.mrf.mxu0
    %720 = vmatprep.mubr.f32.mxu0 0.0
    %721 = vmatmul.mubr.f32.gmra.mxu0 %v129
    %v722 = vpop.f32.mrf.mxu0
    %v723 = vadd.f32 %v184, %v722
    %v724 = vpop.f32.mrf.mxu0
    %725 = vmatprep.mubr.f32.mxu0 0.0
    %726 = vmatmul.mubr.f32.gmra.mxu0 %v130
    %v727 = vpop.f32.mrf.mxu0
    %v728 = vadd.f32 %v184, %v727
    %v729 = vpop.f32.mrf.mxu0
    %730 = vmatprep.mubr.f32.mxu0 0.0
    %731 = vmatmul.mubr.f32.gmra.mxu0 %v131
    %v732 = vpop.f32.mrf.mxu0
    %v733 = vadd.f32 %v184, %v732
    %v734 = vpop.f32.mrf.mxu0
    %735 = vmatprep.mubr.f32.mxu0 0.0
    %736 = vmatmul.mubr.f32.gmra.mxu0 %v132
    %v737 = vpop.f32.mrf.mxu0
    %v738 = vadd.f32 %v184, %v737
    %v739 = vpop.f32.mrf.mxu0
    %740 = vmatprep.mubr.f32.mxu0 0.0
    %741 = vmatmul.mubr.f32.gmra.mxu0 %v133
    %v742 = vpop.f32.mrf.mxu0
    %v743 = vadd.f32 %v184, %v742
    %v744 = vpop.f32.mrf.mxu0
    %745 = vmatprep.mubr.f32.mxu0 0.0
    %746 = vmatmul.mubr.f32.gmra.mxu0 %v134
    %v747 = vpop.f32.mrf.mxu0
    %v748 = vadd.f32 %v184, %v747
    %v749 = vpop.f32.mrf.mxu0
    %750 = vmatprep.mubr.f32.mxu0 0.0
    %751 = vmatmul.mubr.f32.gmra.mxu0 %v135
    %v752 = vpop.f32.mrf.mxu0
    %v753 = vadd.f32 %v184, %v752
    %v754 = vpop.f32.mrf.mxu0
    %755 = vmatprep.mubr.f32.mxu0 0.0
    %756 = vmatmul.mubr.f32.gmra.mxu0 %v136
    %v757 = vpop.f32.mrf.mxu0
    %v758 = vadd.f32 %v184, %v757
    %v759 = vpop.f32.mrf.mxu0
    %760 = vmatprep.mubr.f32.mxu0 0.0
    %761 = vmatmul.mubr.f32.gmra.mxu0 %v137
    %v762 = vpop.f32.mrf.mxu0
    %v763 = vadd.f32 %v184, %v762
    %v764 = vpop.f32.mrf.mxu0
    %765 = vmatprep.mubr.f32.mxu0 0.0
    %766 = vmatmul.mubr.f32.gmra.mxu0 %v138
    %v767 = vpop.f32.mrf.mxu0
    %v768 = vadd.f32 %v184, %v767
    %v769 = vpop.f32.mrf.mxu0
    %770 = vmatprep.mubr.f32.mxu0 0.0
    %771 = vmatmul.mubr.f32.gmra.mxu0 %v139
    %v772 = vpop.f32.mrf.mxu0
    %v773 = vadd.f32 %v184, %v772
    %v774 = vpop.f32.mrf.mxu0
    %775 = vmatprep.mubr.f32.mxu0 0.0
    %776 = vmatmul.mubr.f32.gmra.mxu0 %v140
    %v777 = vpop.f32.mrf.mxu0
    %v778 = vadd.f32 %v184, %v777
    %v779 = vpop.f32.mrf.mxu0
    %780 = vmatprep.mubr.f32.mxu0 0.0
    %781 = vmatmul.mubr.f32.gmra.mxu0 %v141
    %v782 = vpop.f32.mrf.mxu0
    %v783 = vadd.f32 %v184, %v782
    %v784 = vpop.f32.mrf.mxu0
    %785 = vmatprep.mubr.f32.mxu0 0.0
    %786 = vmatmul.mubr.f32.gmra.mxu0 %v142
    %v787 = vpop.f32.mrf.mxu0
    %v788 = vadd.f32 %v184, %v787
    %v789 = vpop.f32.mrf.mxu0
    %790 = vmatprep.mubr.f32.mxu0 0.0
    %791 = vmatmul.mubr.f32.gmra.mxu0 %v143
    %v792 = vpop.f32.mrf.mxu0
    %v793 = vadd.f32 %v184, %v792
    %v794 = vpop.f32.mrf.mxu0
    %795 = vmatprep.mubr.f32.mxu0 0.0
    %796 = vmatmul.mubr.f32.gmra.mxu0 %v144
    %v797 = vpop.f32.mrf.mxu0
    %v798 = vadd.f32 %v184, %v797
    %v799 = vpop.f32.mrf.mxu0
    %800 = vmatprep.mubr.f32.mxu0 0.0
    %801 = vmatmul.mubr.f32.gmra.mxu0 %v145
    %v802 = vpop.f32.mrf.mxu0
    %v803 = vadd.f32 %v184, %v802
    %v804 = vpop.f32.mrf.mxu0
    %805 = vmatprep.mubr.f32.mxu0 0.0
    %806 = vmatmul.mubr.f32.gmra.mxu0 %v146
    %v807 = vpop.f32.mrf.mxu0
    %v808 = vadd.f32 %v184, %v807
    %v809 = vpop.f32.mrf.mxu0
    %810 = vmatprep.mubr.f32.mxu0 0.0
    %811 = vmatmul.mubr.f32.gmra.mxu0 %v147
    %v812 = vpop.f32.mrf.mxu0
    %v813 = vadd.f32 %v184, %v812
    %v814 = vpop.f32.mrf.mxu0
    %815 = vmatprep.mubr.f32.mxu0 0.0
    %816 = vmatmul.mubr.f32.gmra.mxu0 %v148
    %v817 = vpop.f32.mrf.mxu0
    %v818 = vadd.f32 %v184, %v817
    %v819 = vpop.f32.mrf.mxu0
    %820 = vmatprep.mubr.f32.mxu0 0.0
    %821 = vmatmul.mubr.f32.gmra.mxu0 %v149
    %v822 = vpop.f32.mrf.mxu0
    %v823 = vadd.f32 %v184, %v822
    %v824 = vpop.f32.mrf.mxu0
    %825 = vmatprep.mubr.f32.mxu0 0.0
    %826 = vmatmul.mubr.f32.gmra.mxu0 %v150
    %v827 = vpop.f32.mrf.mxu0
    %v828 = vadd.f32 %v184, %v827
    %v829 = vpop.f32.mrf.mxu0
    %830 = vmatprep.mubr.f32.mxu0 0.0
    %831 = vmatmul.mubr.f32.gmra.mxu0 %v151
    %v832 = vpop.f32.mrf.mxu0
    %v833 = vadd.f32 %v184, %v832
    %v834 = vpop.f32.mrf.mxu0
    %835 = vmatprep.mubr.f32.mxu0 0.0
    %836 = vmatmul.mubr.f32.gmra.mxu0 %v152
    %v837 = vpop.f32.mrf.mxu0
    %v838 = vadd.f32 %v184, %v837
    %v839 = vpop.f32.mrf.mxu0
    %840 = vmatprep.mubr.f32.mxu0 0.0
    %841 = vmatmul.mubr.f32.gmra.mxu0 %v153
    %v842 = vpop.f32.mrf.mxu0
    %v843 = vadd.f32 %v184, %v842
    %v844 = vpop.f32.mrf.mxu0
    %845 = vmatprep.mubr.f32.mxu0 0.0
    %846 = vmatmul.mubr.f32.gmra.mxu0 %v154
    %v847 = vpop.f32.mrf.mxu0
    %v848 = vadd.f32 %v184, %v847
    %v849 = vpop.f32.mrf.mxu0
    %850 = vmatprep.mubr.f32.mxu0 0.0
    %851 = vmatmul.mubr.f32.gmra.mxu0 %v155
    %v852 = vpop.f32.mrf.mxu0
    %v853 = vadd.f32 %v184, %v852
    %v854 = vpop.f32.mrf.mxu0
    %855 = vmatprep.mubr.f32.mxu0 0.0
    %856 = vmatmul.mubr.f32.gmra.mxu0 %v156
    %v857 = vpop.f32.mrf.mxu0
    %v858 = vadd.f32 %v184, %v857
    %v859 = vpop.f32.mrf.mxu0
    %860 = vmatprep.mubr.f32.mxu0 0.0
    %861 = vmatmul.mubr.f32.gmra.mxu0 %v157
    %v862 = vpop.f32.mrf.mxu0
    %v863 = vadd.f32 %v184, %v862
    %v864 = vpop.f32.mrf.mxu0
    %865 = vmatprep.mubr.f32.mxu0 0.0
    %866 = vmatmul.mubr.f32.gmra.mxu0 %v158
    %v867 = vpop.f32.mrf.mxu0
    %v868 = vadd.f32 %v184, %v867
    %v869 = vpop.f32.mrf.mxu0
    %870 = vmatprep.mubr.f32.mxu0 0.0
    %871 = vmatmul.mubr.f32.gmra.mxu0 %v159
    %v872 = vpop.f32.mrf.mxu0
    %v873 = vadd.f32 %v184, %v872
    %v874 = vpop.f32.mrf.mxu0
    %875 = vmatprep.mubr.f32.mxu0 0.0
    %876 = vmatmul.mubr.f32.gmra.mxu0 %v160
    %v877 = vpop.f32.mrf.mxu0
    %v878 = vadd.f32 %v184, %v877
    %v879 = vpop.f32.mrf.mxu0
    %880 = vmatprep.mubr.f32.mxu0 0.0
    %881 = vmatmul.mubr.f32.gmra.mxu0 %v161
    %v882 = vpop.f32.mrf.mxu0
    %v883 = vadd.f32 %v184, %v882
    %v884 = vpop.f32.mrf.mxu0
    %885 = vmatprep.mubr.f32.mxu0 0.0
    %886 = vmatmul.mubr.f32.gmra.mxu0 %v162
    %v887 = vpop.f32.mrf.mxu0
    %v888 = vadd.f32 %v184, %v887
    %v889 = vpop.f32.mrf.mxu0
    %890 = vdwg.mxu0
    %891 = vxpose.xlu0.b32.start [1/16] %v253, 128
    %892 = vxpose.xlu0.b32.cont [2/16] %v258, 128
    %893 = vxpose.xlu0.b32.cont [3/16] %v263, 128
    %894 = vxpose.xlu0.b32.cont [4/16] %v268, 128
    %895 = vxpose.xlu0.b32.cont [5/16] %v273, 128
    %896 = vxpose.xlu0.b32.cont [6/16] %v278, 128
    %897 = vxpose.xlu0.b32.cont [7/16] %v283, 128
    %898 = vxpose.xlu0.b32.cont [8/16] %v288, 128
    %899 = vxpose.xlu0.b32.cont [9/16] %v293, 128
    %900 = vxpose.xlu0.b32.cont [10/16] %v298, 128
    %901 = vxpose.xlu0.b32.cont [11/16] %v303, 128
    %902 = vxpose.xlu0.b32.cont [12/16] %v308, 128
    %903 = vxpose.xlu0.b32.cont [13/16] %v313, 128
    %904 = vxpose.xlu0.b32.cont [14/16] %v318, 128
    %905 = vxpose.xlu0.b32.cont [15/16] %v323, 128
    %906 = vxpose.xlu0.b32.end [16/16] %v328, 128
    %v907 = vpop.trf.xlu0
    %v908 = vpop.trf.xlu0
    %v909 = vpop.trf.xlu0
    %v910 = vpop.trf.xlu0
    %v911 = vpop.trf.xlu0
    %v912 = vpop.trf.xlu0
    %v913 = vpop.trf.xlu0
    %v914 = vpop.trf.xlu0
    %v915 = vpop.trf.xlu0
    %v916 = vpop.trf.xlu0
    %v917 = vpop.trf.xlu0
    %v918 = vpop.trf.xlu0
    %v919 = vpop.trf.xlu0
    %v920 = vpop.trf.xlu0
    %v921 = vpop.trf.xlu0
    %v922 = vpop.trf.xlu0
    %923 = vxpose.xlu0.b32.start [1/16] %v333, 128
    %924 = vxpose.xlu0.b32.cont [2/16] %v338, 128
    %925 = vxpose.xlu0.b32.cont [3/16] %v343, 128
    %926 = vxpose.xlu0.b32.cont [4/16] %v348, 128
    %927 = vxpose.xlu0.b32.cont [5/16] %v353, 128
    %928 = vxpose.xlu0.b32.cont [6/16] %v358, 128
    %929 = vxpose.xlu0.b32.cont [7/16] %v363, 128
    %930 = vxpose.xlu0.b32.cont [8/16] %v368, 128
    %931 = vxpose.xlu0.b32.cont [9/16] %v373, 128
    %932 = vxpose.xlu0.b32.cont [10/16] %v378, 128
    %933 = vxpose.xlu0.b32.cont [11/16] %v383, 128
    %934 = vxpose.xlu0.b32.cont [12/16] %v388, 128
    %935 = vxpose.xlu0.b32.cont [13/16] %v393, 128
    %936 = vxpose.xlu0.b32.cont [14/16] %v398, 128
    %937 = vxpose.xlu0.b32.cont [15/16] %v403, 128
    %938 = vxpose.xlu0.b32.end [16/16] %v408, 128
    %v939 = vpop.trf.xlu0
    %v940 = vpop.trf.xlu0
    %v941 = vpop.trf.xlu0
    %v942 = vpop.trf.xlu0
    %v943 = vpop.trf.xlu0
    %v944 = vpop.trf.xlu0
    %v945 = vpop.trf.xlu0
    %v946 = vpop.trf.xlu0
    %v947 = vpop.trf.xlu0
    %v948 = vpop.trf.xlu0
    %v949 = vpop.trf.xlu0
    %v950 = vpop.trf.xlu0
    %v951 = vpop.trf.xlu0
    %v952 = vpop.trf.xlu0
    %v953 = vpop.trf.xlu0
    %v954 = vpop.trf.xlu0
    %955 = vxpose.xlu0.b32.start [1/16] %v413, 128
    %956 = vxpose.xlu0.b32.cont [2/16] %v418, 128
    %957 = vxpose.xlu0.b32.cont [3/16] %v423, 128
    %958 = vxpose.xlu0.b32.cont [4/16] %v428, 128
    %959 = vxpose.xlu0.b32.cont [5/16] %v433, 128
    %960 = vxpose.xlu0.b32.cont [6/16] %v438, 128
    %961 = vxpose.xlu0.b32.cont [7/16] %v443, 128
    %962 = vxpose.xlu0.b32.cont [8/16] %v448, 128
    %963 = vxpose.xlu0.b32.cont [9/16] %v453, 128
    %964 = vxpose.xlu0.b32.cont [10/16] %v458, 128
    %965 = vxpose.xlu0.b32.cont [11/16] %v463, 128
    %966 = vxpose.xlu0.b32.cont [12/16] %v468, 128
    %967 = vxpose.xlu0.b32.cont [13/16] %v473, 128
    %968 = vxpose.xlu0.b32.cont [14/16] %v478, 128
    %969 = vxpose.xlu0.b32.cont [15/16] %v483, 128
    %970 = vxpose.xlu0.b32.end [16/16] %v488, 128
    %v971 = vpop.trf.xlu0
    %v972 = vpop.trf.xlu0
    %v973 = vpop.trf.xlu0
    %v974 = vpop.trf.xlu0
    %v975 = vpop.trf.xlu0
    %v976 = vpop.trf.xlu0
    %v977 = vpop.trf.xlu0
    %v978 = vpop.trf.xlu0
    %v979 = vpop.trf.xlu0
    %v980 = vpop.trf.xlu0
    %v981 = vpop.trf.xlu0
    %v982 = vpop.trf.xlu0
    %v983 = vpop.trf.xlu0
    %v984 = vpop.trf.xlu0
    %v985 = vpop.trf.xlu0
    %v986 = vpop.trf.xlu0
    %987 = vxpose.xlu0.b32.start [1/16] %v493, 128
    %988 = vxpose.xlu0.b32.cont [2/16] %v498, 128
    %989 = vxpose.xlu0.b32.cont [3/16] %v503, 128
    %990 = vxpose.xlu0.b32.cont [4/16] %v508, 128
    %991 = vxpose.xlu0.b32.cont [5/16] %v513, 128
    %992 = vxpose.xlu0.b32.cont [6/16] %v518, 128
    %993 = vxpose.xlu0.b32.cont [7/16] %v523, 128
    %994 = vxpose.xlu0.b32.cont [8/16] %v528, 128
    %995 = vxpose.xlu0.b32.cont [9/16] %v533, 128
    %996 = vxpose.xlu0.b32.cont [10/16] %v538, 128
    %997 = vxpose.xlu0.b32.cont [11/16] %v543, 128
    %998 = vxpose.xlu0.b32.cont [12/16] %v548, 128
    %999 = vxpose.xlu0.b32.cont [13/16] %v553, 128
    %1000 = vxpose.xlu0.b32.cont [14/16] %v558, 128
    %1001 = vxpose.xlu0.b32.cont [15/16] %v563, 128
    %1002 = vxpose.xlu0.b32.end [16/16] %v568, 128
    %v1003 = vpop.trf.xlu0
    %v1004 = vpop.trf.xlu0
    %v1005 = vpop.trf.xlu0
    %v1006 = vpop.trf.xlu0
    %v1007 = vpop.trf.xlu0
    %v1008 = vpop.trf.xlu0
    %v1009 = vpop.trf.xlu0
    %v1010 = vpop.trf.xlu0
    %v1011 = vpop.trf.xlu0
    %v1012 = vpop.trf.xlu0
    %v1013 = vpop.trf.xlu0
    %v1014 = vpop.trf.xlu0
    %v1015 = vpop.trf.xlu0
    %v1016 = vpop.trf.xlu0
    %v1017 = vpop.trf.xlu0
    %v1018 = vpop.trf.xlu0
    %1019 = vxpose.xlu0.b32.start [1/16] %v573, 128
    %1020 = vxpose.xlu0.b32.cont [2/16] %v578, 128
    %1021 = vxpose.xlu0.b32.cont [3/16] %v583, 128
    %1022 = vxpose.xlu0.b32.cont [4/16] %v588, 128
    %1023 = vxpose.xlu0.b32.cont [5/16] %v593, 128
    %1024 = vxpose.xlu0.b32.cont [6/16] %v598, 128
    %1025 = vxpose.xlu0.b32.cont [7/16] %v603, 128
    %1026 = vxpose.xlu0.b32.cont [8/16] %v608, 128
    %1027 = vxpose.xlu0.b32.cont [9/16] %v613, 128
    %1028 = vxpose.xlu0.b32.cont [10/16] %v618, 128
    %1029 = vxpose.xlu0.b32.cont [11/16] %v623, 128
    %1030 = vxpose.xlu0.b32.cont [12/16] %v628, 128
    %1031 = vxpose.xlu0.b32.cont [13/16] %v633, 128
    %1032 = vxpose.xlu0.b32.cont [14/16] %v638, 128
    %1033 = vxpose.xlu0.b32.cont [15/16] %v643, 128
    %1034 = vxpose.xlu0.b32.end [16/16] %v648, 128
    %v1035 = vpop.trf.xlu0
    %v1036 = vpop.trf.xlu0
    %v1037 = vpop.trf.xlu0
    %v1038 = vpop.trf.xlu0
    %v1039 = vpop.trf.xlu0
    %v1040 = vpop.trf.xlu0
    %v1041 = vpop.trf.xlu0
    %v1042 = vpop.trf.xlu0
    %v1043 = vpop.trf.xlu0
    %v1044 = vpop.trf.xlu0
    %v1045 = vpop.trf.xlu0
    %v1046 = vpop.trf.xlu0
    %v1047 = vpop.trf.xlu0
    %v1048 = vpop.trf.xlu0
    %v1049 = vpop.trf.xlu0
    %v1050 = vpop.trf.xlu0
    %1051 = vxpose.xlu0.b32.start [1/16] %v653, 128
    %1052 = vxpose.xlu0.b32.cont [2/16] %v658, 128
    %1053 = vxpose.xlu0.b32.cont [3/16] %v663, 128
    %1054 = vxpose.xlu0.b32.cont [4/16] %v668, 128
    %1055 = vxpose.xlu0.b32.cont [5/16] %v673, 128
    %1056 = vxpose.xlu0.b32.cont [6/16] %v678, 128
    %1057 = vxpose.xlu0.b32.cont [7/16] %v683, 128
    %1058 = vxpose.xlu0.b32.cont [8/16] %v688, 128
    %1059 = vxpose.xlu0.b32.cont [9/16] %v693, 128
    %1060 = vxpose.xlu0.b32.cont [10/16] %v698, 128
    %1061 = vxpose.xlu0.b32.cont [11/16] %v703, 128
    %1062 = vxpose.xlu0.b32.cont [12/16] %v708, 128
    %1063 = vxpose.xlu0.b32.cont [13/16] %v713, 128
    %1064 = vxpose.xlu0.b32.cont [14/16] %v718, 128
    %1065 = vxpose.xlu0.b32.cont [15/16] %v723, 128
    %1066 = vxpose.xlu0.b32.end [16/16] %v728, 128
    %v1067 = vpop.trf.xlu0
    %v1068 = vpop.trf.xlu0
    %v1069 = vpop.trf.xlu0
    %v1070 = vpop.trf.xlu0
    %v1071 = vpop.trf.xlu0
    %v1072 = vpop.trf.xlu0
    %v1073 = vpop.trf.xlu0
    %v1074 = vpop.trf.xlu0
    %v1075 = vpop.trf.xlu0
    %v1076 = vpop.trf.xlu0
    %v1077 = vpop.trf.xlu0
    %v1078 = vpop.trf.xlu0
    %v1079 = vpop.trf.xlu0
    %v1080 = vpop.trf.xlu0
    %v1081 = vpop.trf.xlu0
    %v1082 = vpop.trf.xlu0
    %1083 = vxpose.xlu0.b32.start [1/16] %v733, 128
    %1084 = vxpose.xlu0.b32.cont [2/16] %v738, 128
    %1085 = vxpose.xlu0.b32.cont [3/16] %v743, 128
    %1086 = vxpose.xlu0.b32.cont [4/16] %v748, 128
    %1087 = vxpose.xlu0.b32.cont [5/16] %v753, 128
    %1088 = vxpose.xlu0.b32.cont [6/16] %v758, 128
    %1089 = vxpose.xlu0.b32.cont [7/16] %v763, 128
    %1090 = vxpose.xlu0.b32.cont [8/16] %v768, 128
    %1091 = vxpose.xlu0.b32.cont [9/16] %v773, 128
    %1092 = vxpose.xlu0.b32.cont [10/16] %v778, 128
    %1093 = vxpose.xlu0.b32.cont [11/16] %v783, 128
    %1094 = vxpose.xlu0.b32.cont [12/16] %v788, 128
    %1095 = vxpose.xlu0.b32.cont [13/16] %v793, 128
    %1096 = vxpose.xlu0.b32.cont [14/16] %v798, 128
    %1097 = vxpose.xlu0.b32.cont [15/16] %v803, 128
    %1098 = vxpose.xlu0.b32.end [16/16] %v808, 128
    %v1099 = vpop.trf.xlu0
    %v1100 = vpop.trf.xlu0
    %v1101 = vpop.trf.xlu0
    %v1102 = vpop.trf.xlu0
    %v1103 = vpop.trf.xlu0
    %v1104 = vpop.trf.xlu0
    %v1105 = vpop.trf.xlu0
    %v1106 = vpop.trf.xlu0
    %v1107 = vpop.trf.xlu0
    %v1108 = vpop.trf.xlu0
    %v1109 = vpop.trf.xlu0
    %v1110 = vpop.trf.xlu0
    %v1111 = vpop.trf.xlu0
    %v1112 = vpop.trf.xlu0
    %v1113 = vpop.trf.xlu0
    %v1114 = vpop.trf.xlu0
    %1115 = vxpose.xlu0.b32.start [1/16] %v813, 128
    %1116 = vxpose.xlu0.b32.cont [2/16] %v818, 128
    %1117 = vxpose.xlu0.b32.cont [3/16] %v823, 128
    %1118 = vxpose.xlu0.b32.cont [4/16] %v828, 128
    %1119 = vxpose.xlu0.b32.cont [5/16] %v833, 128
    %1120 = vxpose.xlu0.b32.cont [6/16] %v838, 128
    %1121 = vxpose.xlu0.b32.cont [7/16] %v843, 128
    %1122 = vxpose.xlu0.b32.cont [8/16] %v848, 128
    %1123 = vxpose.xlu0.b32.cont [9/16] %v853, 128
    %1124 = vxpose.xlu0.b32.cont [10/16] %v858, 128
    %1125 = vxpose.xlu0.b32.cont [11/16] %v863, 128
    %1126 = vxpose.xlu0.b32.cont [12/16] %v868, 128
    %1127 = vxpose.xlu0.b32.cont [13/16] %v873, 128
    %1128 = vxpose.xlu0.b32.cont [14/16] %v878, 128
    %1129 = vxpose.xlu0.b32.cont [15/16] %v883, 128
    %1130 = vxpose.xlu0.b32.end [16/16] %v888, 128
    %v1131 = vpop.trf.xlu0
    %v1132 = vpop.trf.xlu0
    %v1133 = vpop.trf.xlu0
    %v1134 = vpop.trf.xlu0
    %v1135 = vpop.trf.xlu0
    %v1136 = vpop.trf.xlu0
    %v1137 = vpop.trf.xlu0
    %v1138 = vpop.trf.xlu0
    %v1139 = vpop.trf.xlu0
    %v1140 = vpop.trf.xlu0
    %v1141 = vpop.trf.xlu0
    %v1142 = vpop.trf.xlu0
    %v1143 = vpop.trf.xlu0
    %v1144 = vpop.trf.xlu0
    %v1145 = vpop.trf.xlu0
    %v1146 = vpop.trf.xlu0
    %v1147 = vld [vmem:[%s1] sm:$0x1]
    %v1148 = vld [vmem:[%s1 + $0x1] sm:$0x1]
    %v1149 = vld [vmem:[%s1 + $0x2] sm:$0x1]
    %v1150 = vld [vmem:[%s1 + $0x3] sm:$0x1]
    %v1151 = vld [vmem:[%s1 + $0x4] sm:$0x1]
    %v1152 = vld [vmem:[%s1 + $0x5] sm:$0x1]
    %v1153 = vld [vmem:[%s1 + $0x6] sm:$0x1]
    %v1154 = vld [vmem:[%s1 + $0x7] sm:$0x1]
    %vm1155 = vcmp.gt.f32.partialorder %v1147, 0.5
    %vm1156 = vcmp.gt.f32.partialorder %v1148, 0.5
    %vm1157 = vcmp.gt.f32.partialorder %v1149, 0.5
    %vm1158 = vcmp.gt.f32.partialorder %v1150, 0.5
    %vm1159 = vcmp.gt.f32.partialorder %v1151, 0.5
    %vm1160 = vcmp.gt.f32.partialorder %v1152, 0.5
    %vm1161 = vcmp.gt.f32.partialorder %v1153, 0.5
    %vm1162 = vcmp.gt.f32.partialorder %v1154, 0.5
    %v1163 = vsel %vm1155, 1, 0
    %v1164 = vsel %vm1156, 1, 0
    %v1165 = vsel %vm1157, 1, 0
    %v1166 = vsel %vm1158, 1, 0
    %v1167 = vsel %vm1159, 1, 0
    %v1168 = vsel %vm1160, 1, 0
    %v1169 = vsel %vm1161, 1, 0
    %v1170 = vsel %vm1162, 1, 0
    %v1171 = vlaneseq
    %v1172 = vshrl.u32 %v1171, 7
    %v1173 = vsub.s32 0, %v1172
    %v1174 = vrot.slane %v1163, %v1173
    %v1175 = vlaneseq
    %v1176 = vshrl.u32 %v1175, 7
    %v1177 = vsub.s32 0, %v1176
    %v1178 = vrot.slane %v1164, %v1177
    %v1179 = vlaneseq
    %v1180 = vshrl.u32 %v1179, 7
    %v1181 = vsub.s32 0, %v1180
    %v1182 = vrot.slane %v1165, %v1181
    %v1183 = vlaneseq
    %v1184 = vshrl.u32 %v1183, 7
    %v1185 = vsub.s32 0, %v1184
    %v1186 = vrot.slane %v1166, %v1185
    %v1187 = vlaneseq
    %v1188 = vshrl.u32 %v1187, 7
    %v1189 = vsub.s32 0, %v1188
    %v1190 = vrot.slane %v1167, %v1189
    %v1191 = vlaneseq
    %v1192 = vshrl.u32 %v1191, 7
    %v1193 = vsub.s32 0, %v1192
    %v1194 = vrot.slane %v1168, %v1193
    %v1195 = vlaneseq
    %v1196 = vshrl.u32 %v1195, 7
    %v1197 = vsub.s32 0, %v1196
    %v1198 = vrot.slane %v1169, %v1197
    %v1199 = vlaneseq
    %v1200 = vshrl.u32 %v1199, 7
    %v1201 = vsub.s32 0, %v1200
    %v1202 = vrot.slane %v1170, %v1201
    %vm1203 = vcmp.eq.s32.totalorder %v1174, 1
    %vm1204 = vcmp.eq.s32.totalorder %v1178, 1
    %vm1205 = vcmp.eq.s32.totalorder %v1182, 1
    %vm1206 = vcmp.eq.s32.totalorder %v1186, 1
    %vm1207 = vcmp.eq.s32.totalorder %v1190, 1
    %vm1208 = vcmp.eq.s32.totalorder %v1194, 1
    %vm1209 = vcmp.eq.s32.totalorder %v1198, 1
    %vm1210 = vcmp.eq.s32.totalorder %v1202, 1
    %v1211 = vsel %vm1203, %v907, -9e+15
    %v1212 = vsel %vm1204, %v939, -9e+15
    %v1213 = vsel %vm1205, %v971, -9e+15
    %v1214 = vsel %vm1206, %v1003, -9e+15
    %v1215 = vsel %vm1207, %v1035, -9e+15
    %v1216 = vsel %vm1208, %v1067, -9e+15
    %v1217 = vsel %vm1209, %v1099, -9e+15
    %v1218 = vsel %vm1210, %v1131, -9e+15
    %vm1219 = vcmask 1043456
    %v1220 = vsel %vm1219, %v1211, -inf
    %1221 = vmax.xlane.f32.xlu0 %v1220
    %v1222 = vpop.xlane.xlu0 %1221
    %v1223 = vsel %vm1219, %v1212, -inf
    %1224 = vmax.xlane.f32.xlu0 %v1223
    %v1225 = vpop.xlane.xlu0 %1224
    %v1226 = vsel %vm1219, %v1213, -inf
    %1227 = vmax.xlane.f32.xlu0 %v1226
    %v1228 = vpop.xlane.xlu0 %1227
    %v1229 = vsel %vm1219, %v1214, -inf
    %1230 = vmax.xlane.f32.xlu0 %v1229
    %v1231 = vpop.xlane.xlu0 %1230
    %v1232 = vsel %vm1219, %v1215, -inf
    %1233 = vmax.xlane.f32.xlu0 %v1232
    %v1234 = vpop.xlane.xlu0 %1233
    %v1235 = vsel %vm1219, %v1216, -inf
    %1236 = vmax.xlane.f32.xlu0 %v1235
    %v1237 = vpop.xlane.xlu0 %1236
    %v1238 = vsel %vm1219, %v1217, -inf
    %1239 = vmax.xlane.f32.xlu0 %v1238
    %v1240 = vpop.xlane.xlu0 %1239
    %v1241 = vsel %vm1219, %v1218, -inf
    %1242 = vmax.xlane.f32.xlu0 %v1241
    %v1243 = vpop.xlane.xlu0 %1242
    %v1244 = vsub.f32 %v1211, %v1222
    %v1245 = vsub.f32 %v1212, %v1225
    %v1246 = vsub.f32 %v1213, %v1228
    %v1247 = vsub.f32 %v1214, %v1231
    %v1248 = vsub.f32 %v1215, %v1234
    %v1249 = vsub.f32 %v1216, %v1237
    %v1250 = vsub.f32 %v1217, %v1240
    %v1251 = vsub.f32 %v1218, %v1243
    %v1252 = vmul.f32 %v1244, 1.442695
    %v1253 = vpow.pop %v1252
    %v1254 = vmul.f32 %v1245, 1.442695
    %v1255 = vpow.pop %v1254
    %v1256 = vmul.f32 %v1246, 1.442695
    %v1257 = vpow.pop %v1256
    %v1258 = vmul.f32 %v1247, 1.442695
    %v1259 = vpow.pop %v1258
    %v1260 = vmul.f32 %v1248, 1.442695
    %v1261 = vpow.pop %v1260
    %v1262 = vmul.f32 %v1249, 1.442695
    %v1263 = vpow.pop %v1262
    %v1264 = vmul.f32 %v1250, 1.442695
    %v1265 = vpow.pop %v1264
    %v1266 = vmul.f32 %v1251, 1.442695
    %v1267 = vpow.pop %v1266
    %v1268 = vlaneseq
    %v1269 = vand.u32 %v1268, 127
    %vm1270 = vcmp.lt.s32.totalorder %v1269, 8
    %v1271 = vsel %vm1270, %v1253, 0.0
    %v1272 = vsel %vm1270, %v1255, 0.0
    %v1273 = vsel %vm1270, %v1257, 0.0
    %v1274 = vsel %vm1270, %v1259, 0.0
    %v1275 = vsel %vm1270, %v1261, 0.0
    %v1276 = vsel %vm1270, %v1263, 0.0
    %v1277 = vsel %vm1270, %v1265, 0.0
    %v1278 = vsel %vm1270, %v1267, 0.0
    %v1279 = vsel %vm1219, %v1271, 0.0
    %1280 = vadd.xlane.f32.xlu0 %v1279
    %v1281 = vpop.xlane.xlu0 %1280
    %v1282 = vsel %vm1219, %v1272, 0.0
    %1283 = vadd.xlane.f32.xlu0 %v1282
    %v1284 = vpop.xlane.xlu0 %1283
    %v1285 = vsel %vm1219, %v1273, 0.0
    %1286 = vadd.xlane.f32.xlu0 %v1285
    %v1287 = vpop.xlane.xlu0 %1286
    %v1288 = vsel %vm1219, %v1274, 0.0
    %1289 = vadd.xlane.f32.xlu0 %v1288
    %v1290 = vpop.xlane.xlu0 %1289
    %v1291 = vsel %vm1219, %v1275, 0.0
    %1292 = vadd.xlane.f32.xlu0 %v1291
    %v1293 = vpop.xlane.xlu0 %1292
    %v1294 = vsel %vm1219, %v1276, 0.0
    %1295 = vadd.xlane.f32.xlu0 %v1294
    %v1296 = vpop.xlane.xlu0 %1295
    %v1297 = vsel %vm1219, %v1277, 0.0
    %1298 = vadd.xlane.f32.xlu0 %v1297
    %v1299 = vpop.xlane.xlu0 %1298
    %v1300 = vsel %vm1219, %v1278, 0.0
    %1301 = vadd.xlane.f32.xlu0 %v1300
    %v1302 = vpop.xlane.xlu0 %1301
    %v1303 = vrcp.pop %v1281
    %v1304 = vrcp.pop %v1284
    %v1305 = vrcp.pop %v1287
    %v1306 = vrcp.pop %v1290
    %v1307 = vrcp.pop %v1293
    %v1308 = vrcp.pop %v1296
    %v1309 = vrcp.pop %v1299
    %v1310 = vrcp.pop %v1302
    %v1311 = vmul.f32 %v1281, %v1303
    %v1312 = vmul.f32 %v1284, %v1304
    %v1313 = vmul.f32 %v1287, %v1305
    %v1314 = vmul.f32 %v1290, %v1306
    %v1315 = vmul.f32 %v1293, %v1307
    %v1316 = vmul.f32 %v1296, %v1308
    %v1317 = vmul.f32 %v1299, %v1309
    %v1318 = vmul.f32 %v1302, %v1310
    %v1319 = vsub.f32 2.0, %v1311
    %v1320 = vsub.f32 2.0, %v1312
    %v1321 = vsub.f32 2.0, %v1313
    %v1322 = vsub.f32 2.0, %v1314
    %v1323 = vsub.f32 2.0, %v1315
    %v1324 = vsub.f32 2.0, %v1316
    %v1325 = vsub.f32 2.0, %v1317
    %v1326 = vsub.f32 2.0, %v1318
    %v1327 = vmul.f32 %v1303, %v1319
    %v1328 = vmul.f32 %v1304, %v1320
    %v1329 = vmul.f32 %v1305, %v1321
    %v1330 = vmul.f32 %v1306, %v1322
    %v1331 = vmul.f32 %v1307, %v1323
    %v1332 = vmul.f32 %v1308, %v1324
    %v1333 = vmul.f32 %v1309, %v1325
    %v1334 = vmul.f32 %v1310, %v1326
    %v1335 = vmul.f32 %v1271, %v1327
    %v1336 = vmul.f32 %v1272, %v1328
    %v1337 = vmul.f32 %v1273, %v1329
    %v1338 = vmul.f32 %v1274, %v1330
    %v1339 = vmul.f32 %v1275, %v1331
    %v1340 = vmul.f32 %v1276, %v1332
    %v1341 = vmul.f32 %v1277, %v1333
    %v1342 = vmul.f32 %v1278, %v1334
    %1343 = vst [vmem:[#allocation6] sm:$0xf] %v1335
    %1344 = vst [vmem:[#allocation6 + $0x4] sm:$0xf] %v1336
    %1345 = vst [vmem:[#allocation6 + $0x8] sm:$0xf] %v1337
    %1346 = vst [vmem:[#allocation6 + $0xc] sm:$0xf] %v1338
    %1347 = vst [vmem:[#allocation6 + $0x10] sm:$0xf] %v1339
    %1348 = vst [vmem:[#allocation6 + $0x14] sm:$0xf] %v1340
    %1349 = vst [vmem:[#allocation6 + $0x18] sm:$0xf] %v1341
    %1350 = vst [vmem:[#allocation6 + $0x1c] sm:$0xf] %v1342
    %v1351 = vsel %vm1219, %v1335, 0.0
    %v1352 = vrot.slane %v1351, 4
    %v1353 = vadd.f32 %v1351, %v1352
    %v1354 = vrot.slane %v1353, 2
    %v1355 = vadd.f32 %v1353, %v1354
    %v1356 = vrot.slane %v1355, 1
    %v1357 = vadd.f32 %v1355, %v1356
    %v1358 = vsel %vm1219, %v1336, 0.0
    %v1359 = vrot.slane %v1358, 4
    %v1360 = vadd.f32 %v1358, %v1359
    %v1361 = vrot.slane %v1360, 2
    %v1362 = vadd.f32 %v1360, %v1361
    %v1363 = vrot.slane %v1362, 1
    %v1364 = vadd.f32 %v1362, %v1363
    %v1365 = vsel %vm1219, %v1337, 0.0
    %v1366 = vrot.slane %v1365, 4
    %v1367 = vadd.f32 %v1365, %v1366
    %v1368 = vrot.slane %v1367, 2
    %v1369 = vadd.f32 %v1367, %v1368
    %v1370 = vrot.slane %v1369, 1
    %v1371 = vadd.f32 %v1369, %v1370
    %v1372 = vsel %vm1219, %v1338, 0.0
    %v1373 = vrot.slane %v1372, 4
    %v1374 = vadd.f32 %v1372, %v1373
    %v1375 = vrot.slane %v1374, 2
    %v1376 = vadd.f32 %v1374, %v1375
    %v1377 = vrot.slane %v1376, 1
    %v1378 = vadd.f32 %v1376, %v1377
    %v1379 = vsel %vm1219, %v1339, 0.0
    %v1380 = vrot.slane %v1379, 4
    %v1381 = vadd.f32 %v1379, %v1380
    %v1382 = vrot.slane %v1381, 2
    %v1383 = vadd.f32 %v1381, %v1382
    %v1384 = vrot.slane %v1383, 1
    %v1385 = vadd.f32 %v1383, %v1384
    %v1386 = vsel %vm1219, %v1340, 0.0
    %v1387 = vrot.slane %v1386, 4
    %v1388 = vadd.f32 %v1386, %v1387
    %v1389 = vrot.slane %v1388, 2
    %v1390 = vadd.f32 %v1388, %v1389
    %v1391 = vrot.slane %v1390, 1
    %v1392 = vadd.f32 %v1390, %v1391
    %v1393 = vsel %vm1219, %v1341, 0.0
    %v1394 = vrot.slane %v1393, 4
    %v1395 = vadd.f32 %v1393, %v1394
    %v1396 = vrot.slane %v1395, 2
    %v1397 = vadd.f32 %v1395, %v1396
    %v1398 = vrot.slane %v1397, 1
    %v1399 = vadd.f32 %v1397, %v1398
    %v1400 = vsel %vm1219, %v1342, 0.0
    %v1401 = vrot.slane %v1400, 4
    %v1402 = vadd.f32 %v1400, %v1401
    %v1403 = vrot.slane %v1402, 2
    %v1404 = vadd.f32 %v1402, %v1403
    %v1405 = vrot.slane %v1404, 1
    %v1406 = vadd.f32 %v1404, %v1405
    %1408 = vbcast.lane.b32.xlu0 %v1357, 256
    %v1409 = vpop.permute.xlu0 %1408
    %s1411 = sor.u32 256, 8
    %1412 = vbcast.lane.b32.xlu0 %v1357, %s1411
    %v1413 = vpop.permute.xlu0 %1412
    %s1415 = sor.u32 256, 16
    %1416 = vbcast.lane.b32.xlu0 %v1357, %s1415
    %v1417 = vpop.permute.xlu0 %1416
    %s1419 = sor.u32 256, 24
    %1420 = vbcast.lane.b32.xlu0 %v1357, %s1419
    %v1421 = vpop.permute.xlu0 %1420
    %s1423 = sor.u32 256, 32
    %1424 = vbcast.lane.b32.xlu0 %v1357, %s1423
    %v1425 = vpop.permute.xlu0 %1424
    %s1427 = sor.u32 256, 40
    %1428 = vbcast.lane.b32.xlu0 %v1357, %s1427
    %v1429 = vpop.permute.xlu0 %1428
    %s1431 = sor.u32 256, 48
    %1432 = vbcast.lane.b32.xlu0 %v1357, %s1431
    %v1433 = vpop.permute.xlu0 %1432
    %s1435 = sor.u32 256, 56
    %1436 = vbcast.lane.b32.xlu0 %v1357, %s1435
    %v1437 = vpop.permute.xlu0 %1436
    %s1439 = sor.u32 256, 64
    %1440 = vbcast.lane.b32.xlu0 %v1357, %s1439
    %v1441 = vpop.permute.xlu0 %1440
    %s1443 = sor.u32 256, 72
    %1444 = vbcast.lane.b32.xlu0 %v1357, %s1443
    %v1445 = vpop.permute.xlu0 %1444
    %s1447 = sor.u32 256, 80
    %1448 = vbcast.lane.b32.xlu0 %v1357, %s1447
    %v1449 = vpop.permute.xlu0 %1448
    %s1451 = sor.u32 256, 88
    %1452 = vbcast.lane.b32.xlu0 %v1357, %s1451
    %v1453 = vpop.permute.xlu0 %1452
    %s1455 = sor.u32 256, 96
    %1456 = vbcast.lane.b32.xlu0 %v1357, %s1455
    %v1457 = vpop.permute.xlu0 %1456
    %s1459 = sor.u32 256, 104
    %1460 = vbcast.lane.b32.xlu0 %v1357, %s1459
    %v1461 = vpop.permute.xlu0 %1460
    %s1463 = sor.u32 256, 112
    %1464 = vbcast.lane.b32.xlu0 %v1357, %s1463
    %v1465 = vpop.permute.xlu0 %1464
    %s1467 = sor.u32 256, 120
    %1468 = vbcast.lane.b32.xlu0 %v1357, %s1467
    %v1469 = vpop.permute.xlu0 %1468
    %1471 = vbcast.lane.b32.xlu0 %v1364, 256
    %v1472 = vpop.permute.xlu0 %1471
    %s1474 = sor.u32 256, 8
    %1475 = vbcast.lane.b32.xlu0 %v1364, %s1474
    %v1476 = vpop.permute.xlu0 %1475
    %s1478 = sor.u32 256, 16
    %1479 = vbcast.lane.b32.xlu0 %v1364, %s1478
    %v1480 = vpop.permute.xlu0 %1479
    %s1482 = sor.u32 256, 24
    %1483 = vbcast.lane.b32.xlu0 %v1364, %s1482
    %v1484 = vpop.permute.xlu0 %1483
    %s1486 = sor.u32 256, 32
    %1487 = vbcast.lane.b32.xlu0 %v1364, %s1486
    %v1488 = vpop.permute.xlu0 %1487
    %s1490 = sor.u32 256, 40
    %1491 = vbcast.lane.b32.xlu0 %v1364, %s1490
    %v1492 = vpop.permute.xlu0 %1491
    %s1494 = sor.u32 256, 48
    %1495 = vbcast.lane.b32.xlu0 %v1364, %s1494
    %v1496 = vpop.permute.xlu0 %1495
    %s1498 = sor.u32 256, 56
    %1499 = vbcast.lane.b32.xlu0 %v1364, %s1498
    %v1500 = vpop.permute.xlu0 %1499
    %s1502 = sor.u32 256, 64
    %1503 = vbcast.lane.b32.xlu0 %v1364, %s1502
    %v1504 = vpop.permute.xlu0 %1503
    %s1506 = sor.u32 256, 72
    %1507 = vbcast.lane.b32.xlu0 %v1364, %s1506
    %v1508 = vpop.permute.xlu0 %1507
    %s1510 = sor.u32 256, 80
    %1511 = vbcast.lane.b32.xlu0 %v1364, %s1510
    %v1512 = vpop.permute.xlu0 %1511
    %s1514 = sor.u32 256, 88
    %1515 = vbcast.lane.b32.xlu0 %v1364, %s1514
    %v1516 = vpop.permute.xlu0 %1515
    %s1518 = sor.u32 256, 96
    %1519 = vbcast.lane.b32.xlu0 %v1364, %s1518
    %v1520 = vpop.permute.xlu0 %1519
    %s1522 = sor.u32 256, 104
    %1523 = vbcast.lane.b32.xlu0 %v1364, %s1522
    %v1524 = vpop.permute.xlu0 %1523
    %s1526 = sor.u32 256, 112
    %1527 = vbcast.lane.b32.xlu0 %v1364, %s1526
    %v1528 = vpop.permute.xlu0 %1527
    %s1530 = sor.u32 256, 120
    %1531 = vbcast.lane.b32.xlu0 %v1364, %s1530
    %v1532 = vpop.permute.xlu0 %1531
    %1534 = vbcast.lane.b32.xlu0 %v1371, 256
    %v1535 = vpop.permute.xlu0 %1534
    %s1537 = sor.u32 256, 8
    %1538 = vbcast.lane.b32.xlu0 %v1371, %s1537
    %v1539 = vpop.permute.xlu0 %1538
    %s1541 = sor.u32 256, 16
    %1542 = vbcast.lane.b32.xlu0 %v1371, %s1541
    %v1543 = vpop.permute.xlu0 %1542
    %s1545 = sor.u32 256, 24
    %1546 = vbcast.lane.b32.xlu0 %v1371, %s1545
    %v1547 = vpop.permute.xlu0 %1546
    %s1549 = sor.u32 256, 32
    %1550 = vbcast.lane.b32.xlu0 %v1371, %s1549
    %v1551 = vpop.permute.xlu0 %1550
    %s1553 = sor.u32 256, 40
    %1554 = vbcast.lane.b32.xlu0 %v1371, %s1553
    %v1555 = vpop.permute.xlu0 %1554
    %s1557 = sor.u32 256, 48
    %1558 = vbcast.lane.b32.xlu0 %v1371, %s1557
    %v1559 = vpop.permute.xlu0 %1558
    %s1561 = sor.u32 256, 56
    %1562 = vbcast.lane.b32.xlu0 %v1371, %s1561
    %v1563 = vpop.permute.xlu0 %1562
    %s1565 = sor.u32 256, 64
    %1566 = vbcast.lane.b32.xlu0 %v1371, %s1565
    %v1567 = vpop.permute.xlu0 %1566
    %s1569 = sor.u32 256, 72
    %1570 = vbcast.lane.b32.xlu0 %v1371, %s1569
    %v1571 = vpop.permute.xlu0 %1570
    %s1573 = sor.u32 256, 80
    %1574 = vbcast.lane.b32.xlu0 %v1371, %s1573
    %v1575 = vpop.permute.xlu0 %1574
    %s1577 = sor.u32 256, 88
    %1578 = vbcast.lane.b32.xlu0 %v1371, %s1577
    %v1579 = vpop.permute.xlu0 %1578
    %s1581 = sor.u32 256, 96
    %1582 = vbcast.lane.b32.xlu0 %v1371, %s1581
    %v1583 = vpop.permute.xlu0 %1582
    %s1585 = sor.u32 256, 104
    %1586 = vbcast.lane.b32.xlu0 %v1371, %s1585
    %v1587 = vpop.permute.xlu0 %1586
    %s1589 = sor.u32 256, 112
    %1590 = vbcast.lane.b32.xlu0 %v1371, %s1589
    %v1591 = vpop.permute.xlu0 %1590
    %s1593 = sor.u32 256, 120
    %1594 = vbcast.lane.b32.xlu0 %v1371, %s1593
    %v1595 = vpop.permute.xlu0 %1594
    %1597 = vbcast.lane.b32.xlu0 %v1378, 256
    %v1598 = vpop.permute.xlu0 %1597
    %s1600 = sor.u32 256, 8
    %1601 = vbcast.lane.b32.xlu0 %v1378, %s1600
    %v1602 = vpop.permute.xlu0 %1601
    %s1604 = sor.u32 256, 16
    %1605 = vbcast.lane.b32.xlu0 %v1378, %s1604
    %v1606 = vpop.permute.xlu0 %1605
    %s1608 = sor.u32 256, 24
    %1609 = vbcast.lane.b32.xlu0 %v1378, %s1608
    %v1610 = vpop.permute.xlu0 %1609
    %s1612 = sor.u32 256, 32
    %1613 = vbcast.lane.b32.xlu0 %v1378, %s1612
    %v1614 = vpop.permute.xlu0 %1613
    %s1616 = sor.u32 256, 40
    %1617 = vbcast.lane.b32.xlu0 %v1378, %s1616
    %v1618 = vpop.permute.xlu0 %1617
    %s1620 = sor.u32 256, 48
    %1621 = vbcast.lane.b32.xlu0 %v1378, %s1620
    %v1622 = vpop.permute.xlu0 %1621
    %s1624 = sor.u32 256, 56
    %1625 = vbcast.lane.b32.xlu0 %v1378, %s1624
    %v1626 = vpop.permute.xlu0 %1625
    %s1628 = sor.u32 256, 64
    %1629 = vbcast.lane.b32.xlu0 %v1378, %s1628
    %v1630 = vpop.permute.xlu0 %1629
    %s1632 = sor.u32 256, 72
    %1633 = vbcast.lane.b32.xlu0 %v1378, %s1632
    %v1634 = vpop.permute.xlu0 %1633
    %s1636 = sor.u32 256, 80
    %1637 = vbcast.lane.b32.xlu0 %v1378, %s1636
    %v1638 = vpop.permute.xlu0 %1637
    %s1640 = sor.u32 256, 88
    %1641 = vbcast.lane.b32.xlu0 %v1378, %s1640
    %v1642 = vpop.permute.xlu0 %1641
    %s1644 = sor.u32 256, 96
    %1645 = vbcast.lane.b32.xlu0 %v1378, %s1644
    %v1646 = vpop.permute.xlu0 %1645
    %s1648 = sor.u32 256, 104
    %1649 = vbcast.lane.b32.xlu0 %v1378, %s1648
    %v1650 = vpop.permute.xlu0 %1649
    %s1652 = sor.u32 256, 112
    %1653 = vbcast.lane.b32.xlu0 %v1378, %s1652
    %v1654 = vpop.permute.xlu0 %1653
    %s1656 = sor.u32 256, 120
    %1657 = vbcast.lane.b32.xlu0 %v1378, %s1656
    %v1658 = vpop.permute.xlu0 %1657
    %1660 = vbcast.lane.b32.xlu0 %v1385, 256
    %v1661 = vpop.permute.xlu0 %1660
    %s1663 = sor.u32 256, 8
    %1664 = vbcast.lane.b32.xlu0 %v1385, %s1663
    %v1665 = vpop.permute.xlu0 %1664
    %s1667 = sor.u32 256, 16
    %1668 = vbcast.lane.b32.xlu0 %v1385, %s1667
    %v1669 = vpop.permute.xlu0 %1668
    %s1671 = sor.u32 256, 24
    %1672 = vbcast.lane.b32.xlu0 %v1385, %s1671
    %v1673 = vpop.permute.xlu0 %1672
    %s1675 = sor.u32 256, 32
    %1676 = vbcast.lane.b32.xlu0 %v1385, %s1675
    %v1677 = vpop.permute.xlu0 %1676
    %s1679 = sor.u32 256, 40
    %1680 = vbcast.lane.b32.xlu0 %v1385, %s1679
    %v1681 = vpop.permute.xlu0 %1680
    %s1683 = sor.u32 256, 48
    %1684 = vbcast.lane.b32.xlu0 %v1385, %s1683
    %v1685 = vpop.permute.xlu0 %1684
    %s1687 = sor.u32 256, 56
    %1688 = vbcast.lane.b32.xlu0 %v1385, %s1687
    %v1689 = vpop.permute.xlu0 %1688
    %s1691 = sor.u32 256, 64
    %1692 = vbcast.lane.b32.xlu0 %v1385, %s1691
    %v1693 = vpop.permute.xlu0 %1692
    %s1695 = sor.u32 256, 72
    %1696 = vbcast.lane.b32.xlu0 %v1385, %s1695
    %v1697 = vpop.permute.xlu0 %1696
    %s1699 = sor.u32 256, 80
    %1700 = vbcast.lane.b32.xlu0 %v1385, %s1699
    %v1701 = vpop.permute.xlu0 %1700
    %s1703 = sor.u32 256, 88
    %1704 = vbcast.lane.b32.xlu0 %v1385, %s1703
    %v1705 = vpop.permute.xlu0 %1704
    %s1707 = sor.u32 256, 96
    %1708 = vbcast.lane.b32.xlu0 %v1385, %s1707
    %v1709 = vpop.permute.xlu0 %1708
    %s1711 = sor.u32 256, 104
    %1712 = vbcast.lane.b32.xlu0 %v1385, %s1711
    %v1713 = vpop.permute.xlu0 %1712
    %s1715 = sor.u32 256, 112
    %1716 = vbcast.lane.b32.xlu0 %v1385, %s1715
    %v1717 = vpop.permute.xlu0 %1716
    %s1719 = sor.u32 256, 120
    %1720 = vbcast.lane.b32.xlu0 %v1385, %s1719
    %v1721 = vpop.permute.xlu0 %1720
    %1723 = vbcast.lane.b32.xlu0 %v1392, 256
    %v1724 = vpop.permute.xlu0 %1723
    %s1726 = sor.u32 256, 8
    %1727 = vbcast.lane.b32.xlu0 %v1392, %s1726
    %v1728 = vpop.permute.xlu0 %1727
    %s1730 = sor.u32 256, 16
    %1731 = vbcast.lane.b32.xlu0 %v1392, %s1730
    %v1732 = vpop.permute.xlu0 %1731
    %s1734 = sor.u32 256, 24
    %1735 = vbcast.lane.b32.xlu0 %v1392, %s1734
    %v1736 = vpop.permute.xlu0 %1735
    %s1738 = sor.u32 256, 32
    %1739 = vbcast.lane.b32.xlu0 %v1392, %s1738
    %v1740 = vpop.permute.xlu0 %1739
    %s1742 = sor.u32 256, 40
    %1743 = vbcast.lane.b32.xlu0 %v1392, %s1742
    %v1744 = vpop.permute.xlu0 %1743
    %s1746 = sor.u32 256, 48
    %1747 = vbcast.lane.b32.xlu0 %v1392, %s1746
    %v1748 = vpop.permute.xlu0 %1747
    %s1750 = sor.u32 256, 56
    %1751 = vbcast.lane.b32.xlu0 %v1392, %s1750
    %v1752 = vpop.permute.xlu0 %1751
    %s1754 = sor.u32 256, 64
    %1755 = vbcast.lane.b32.xlu0 %v1392, %s1754
    %v1756 = vpop.permute.xlu0 %1755
    %s1758 = sor.u32 256, 72
    %1759 = vbcast.lane.b32.xlu0 %v1392, %s1758
    %v1760 = vpop.permute.xlu0 %1759
    %s1762 = sor.u32 256, 80
    %1763 = vbcast.lane.b32.xlu0 %v1392, %s1762
    %v1764 = vpop.permute.xlu0 %1763
    %s1766 = sor.u32 256, 88
    %1767 = vbcast.lane.b32.xlu0 %v1392, %s1766
    %v1768 = vpop.permute.xlu0 %1767
    %s1770 = sor.u32 256, 96
    %1771 = vbcast.lane.b32.xlu0 %v1392, %s1770
    %v1772 = vpop.permute.xlu0 %1771
    %s1774 = sor.u32 256, 104
    %1775 = vbcast.lane.b32.xlu0 %v1392, %s1774
    %v1776 = vpop.permute.xlu0 %1775
    %s1778 = sor.u32 256, 112
    %1779 = vbcast.lane.b32.xlu0 %v1392, %s1778
    %v1780 = vpop.permute.xlu0 %1779
    %s1782 = sor.u32 256, 120
    %1783 = vbcast.lane.b32.xlu0 %v1392, %s1782
    %v1784 = vpop.permute.xlu0 %1783
    %1786 = vbcast.lane.b32.xlu0 %v1399, 256
    %v1787 = vpop.permute.xlu0 %1786
    %s1789 = sor.u32 256, 8
    %1790 = vbcast.lane.b32.xlu0 %v1399, %s1789
    %v1791 = vpop.permute.xlu0 %1790
    %s1793 = sor.u32 256, 16
    %1794 = vbcast.lane.b32.xlu0 %v1399, %s1793
    %v1795 = vpop.permute.xlu0 %1794
    %s1797 = sor.u32 256, 24
    %1798 = vbcast.lane.b32.xlu0 %v1399, %s1797
    %v1799 = vpop.permute.xlu0 %1798
    %s1801 = sor.u32 256, 32
    %1802 = vbcast.lane.b32.xlu0 %v1399, %s1801
    %v1803 = vpop.permute.xlu0 %1802
    %s1805 = sor.u32 256, 40
    %1806 = vbcast.lane.b32.xlu0 %v1399, %s1805
    %v1807 = vpop.permute.xlu0 %1806
    %s1809 = sor.u32 256, 48
    %1810 = vbcast.lane.b32.xlu0 %v1399, %s1809
    %v1811 = vpop.permute.xlu0 %1810
    %s1813 = sor.u32 256, 56
    %1814 = vbcast.lane.b32.xlu0 %v1399, %s1813
    %v1815 = vpop.permute.xlu0 %1814
    %s1817 = sor.u32 256, 64
    %1818 = vbcast.lane.b32.xlu0 %v1399, %s1817
    %v1819 = vpop.permute.xlu0 %1818
    %s1821 = sor.u32 256, 72
    %1822 = vbcast.lane.b32.xlu0 %v1399, %s1821
    %v1823 = vpop.permute.xlu0 %1822
    %s1825 = sor.u32 256, 80
    %1826 = vbcast.lane.b32.xlu0 %v1399, %s1825
    %v1827 = vpop.permute.xlu0 %1826
    %s1829 = sor.u32 256, 88
    %1830 = vbcast.lane.b32.xlu0 %v1399, %s1829
    %v1831 = vpop.permute.xlu0 %1830
    %s1833 = sor.u32 256, 96
    %1834 = vbcast.lane.b32.xlu0 %v1399, %s1833
    %v1835 = vpop.permute.xlu0 %1834
    %s1837 = sor.u32 256, 104
    %1838 = vbcast.lane.b32.xlu0 %v1399, %s1837
    %v1839 = vpop.permute.xlu0 %1838
    %s1841 = sor.u32 256, 112
    %1842 = vbcast.lane.b32.xlu0 %v1399, %s1841
    %v1843 = vpop.permute.xlu0 %1842
    %s1845 = sor.u32 256, 120
    %1846 = vbcast.lane.b32.xlu0 %v1399, %s1845
    %v1847 = vpop.permute.xlu0 %1846
    %1849 = vbcast.lane.b32.xlu0 %v1406, 256
    %v1850 = vpop.permute.xlu0 %1849
    %s1852 = sor.u32 256, 8
    %1853 = vbcast.lane.b32.xlu0 %v1406, %s1852
    %v1854 = vpop.permute.xlu0 %1853
    %s1856 = sor.u32 256, 16
    %1857 = vbcast.lane.b32.xlu0 %v1406, %s1856
    %v1858 = vpop.permute.xlu0 %1857
    %s1860 = sor.u32 256, 24
    %1861 = vbcast.lane.b32.xlu0 %v1406, %s1860
    %v1862 = vpop.permute.xlu0 %1861
    %s1864 = sor.u32 256, 32
    %1865 = vbcast.lane.b32.xlu0 %v1406, %s1864
    %v1866 = vpop.permute.xlu0 %1865
    %s1868 = sor.u32 256, 40
    %1869 = vbcast.lane.b32.xlu0 %v1406, %s1868
    %v1870 = vpop.permute.xlu0 %1869
    %s1872 = sor.u32 256, 48
    %1873 = vbcast.lane.b32.xlu0 %v1406, %s1872
    %v1874 = vpop.permute.xlu0 %1873
    %s1876 = sor.u32 256, 56
    %1877 = vbcast.lane.b32.xlu0 %v1406, %s1876
    %v1878 = vpop.permute.xlu0 %1877
    %s1880 = sor.u32 256, 64
    %1881 = vbcast.lane.b32.xlu0 %v1406, %s1880
    %v1882 = vpop.permute.xlu0 %1881
    %s1884 = sor.u32 256, 72
    %1885 = vbcast.lane.b32.xlu0 %v1406, %s1884
    %v1886 = vpop.permute.xlu0 %1885
    %s1888 = sor.u32 256, 80
    %1889 = vbcast.lane.b32.xlu0 %v1406, %s1888
    %v1890 = vpop.permute.xlu0 %1889
    %s1892 = sor.u32 256, 88
    %1893 = vbcast.lane.b32.xlu0 %v1406, %s1892
    %v1894 = vpop.permute.xlu0 %1893
    %s1896 = sor.u32 256, 96
    %1897 = vbcast.lane.b32.xlu0 %v1406, %s1896
    %v1898 = vpop.permute.xlu0 %1897
    %s1900 = sor.u32 256, 104
    %1901 = vbcast.lane.b32.xlu0 %v1406, %s1900
    %v1902 = vpop.permute.xlu0 %1901
    %s1904 = sor.u32 256, 112
    %1905 = vbcast.lane.b32.xlu0 %v1406, %s1904
    %v1906 = vpop.permute.xlu0 %1905
    %s1908 = sor.u32 256, 120
    %1909 = vbcast.lane.b32.xlu0 %v1406, %s1908
    %v1910 = vpop.permute.xlu0 %1909
    %v1911 = vmul.f32 %v1409, %v35
    %v1912 = vmul.f32 %v1413, %v36
    %v1913 = vmul.f32 %v1417, %v37
    %v1914 = vmul.f32 %v1421, %v38
    %v1915 = vmul.f32 %v1425, %v39
    %v1916 = vmul.f32 %v1429, %v40
    %v1917 = vmul.f32 %v1433, %v41
    %v1918 = vmul.f32 %v1437, %v42
    %v1919 = vmul.f32 %v1441, %v43
    %v1920 = vmul.f32 %v1445, %v44
    %v1921 = vmul.f32 %v1449, %v45
    %v1922 = vmul.f32 %v1453, %v46
    %v1923 = vmul.f32 %v1457, %v47
    %v1924 = vmul.f32 %v1461, %v48
    %v1925 = vmul.f32 %v1465, %v49
    %v1926 = vmul.f32 %v1469, %v50
    %v1927 = vmul.f32 %v1472, %v51
    %v1928 = vmul.f32 %v1476, %v52
    %v1929 = vmul.f32 %v1480, %v53
    %v1930 = vmul.f32 %v1484, %v54
    %v1931 = vmul.f32 %v1488, %v55
    %v1932 = vmul.f32 %v1492, %v56
    %v1933 = vmul.f32 %v1496, %v57
    %v1934 = vmul.f32 %v1500, %v58
    %v1935 = vmul.f32 %v1504, %v59
    %v1936 = vmul.f32 %v1508, %v60
    %v1937 = vmul.f32 %v1512, %v61
    %v1938 = vmul.f32 %v1516, %v62
    %v1939 = vmul.f32 %v1520, %v63
    %v1940 = vmul.f32 %v1524, %v64
    %v1941 = vmul.f32 %v1528, %v65
    %v1942 = vmul.f32 %v1532, %v66
    %v1943 = vmul.f32 %v1535, %v67
    %v1944 = vmul.f32 %v1539, %v68
    %v1945 = vmul.f32 %v1543, %v69
    %v1946 = vmul.f32 %v1547, %v70
    %v1947 = vmul.f32 %v1551, %v71
    %v1948 = vmul.f32 %v1555, %v72
    %v1949 = vmul.f32 %v1559, %v73
    %v1950 = vmul.f32 %v1563, %v74
    %v1951 = vmul.f32 %v1567, %v75
    %v1952 = vmul.f32 %v1571, %v76
    %v1953 = vmul.f32 %v1575, %v77
    %v1954 = vmul.f32 %v1579, %v78
    %v1955 = vmul.f32 %v1583, %v79
    %v1956 = vmul.f32 %v1587, %v80
    %v1957 = vmul.f32 %v1591, %v81
    %v1958 = vmul.f32 %v1595, %v82
    %v1959 = vmul.f32 %v1598, %v83
    %v1960 = vmul.f32 %v1602, %v84
    %v1961 = vmul.f32 %v1606, %v85
    %v1962 = vmul.f32 %v1610, %v86
    %v1963 = vmul.f32 %v1614, %v87
    %v1964 = vmul.f32 %v1618, %v88
    %v1965 = vmul.f32 %v1622, %v89
    %v1966 = vmul.f32 %v1626, %v90
    %v1967 = vmul.f32 %v1630, %v91
    %v1968 = vmul.f32 %v1634, %v92
    %v1969 = vmul.f32 %v1638, %v93
    %v1970 = vmul.f32 %v1642, %v94
    %v1971 = vmul.f32 %v1646, %v95
    %v1972 = vmul.f32 %v1650, %v96
    %v1973 = vmul.f32 %v1654, %v97
    %v1974 = vmul.f32 %v1658, %v98
    %v1975 = vmul.f32 %v1661, %v99
    %v1976 = vmul.f32 %v1665, %v100
    %v1977 = vmul.f32 %v1669, %v101
    %v1978 = vmul.f32 %v1673, %v102
    %v1979 = vmul.f32 %v1677, %v103
    %v1980 = vmul.f32 %v1681, %v104
    %v1981 = vmul.f32 %v1685, %v105
    %v1982 = vmul.f32 %v1689, %v106
    %v1983 = vmul.f32 %v1693, %v107
    %v1984 = vmul.f32 %v1697, %v108
    %v1985 = vmul.f32 %v1701, %v109
    %v1986 = vmul.f32 %v1705, %v110
    %v1987 = vmul.f32 %v1709, %v111
    %v1988 = vmul.f32 %v1713, %v112
    %v1989 = vmul.f32 %v1717, %v113
    %v1990 = vmul.f32 %v1721, %v114
    %v1991 = vmul.f32 %v1724, %v115
    %v1992 = vmul.f32 %v1728, %v116
    %v1993 = vmul.f32 %v1732, %v117
    %v1994 = vmul.f32 %v1736, %v118
    %v1995 = vmul.f32 %v1740, %v119
    %v1996 = vmul.f32 %v1744, %v120
    %v1997 = vmul.f32 %v1748, %v121
    %v1998 = vmul.f32 %v1752, %v122
    %v1999 = vmul.f32 %v1756, %v123
    %v2000 = vmul.f32 %v1760, %v124
    %v2001 = vmul.f32 %v1764, %v125
    %v2002 = vmul.f32 %v1768, %v126
    %v2003 = vmul.f32 %v1772, %v127
    %v2004 = vmul.f32 %v1776, %v128
    %v2005 = vmul.f32 %v1780, %v129
    %v2006 = vmul.f32 %v1784, %v130
    %v2007 = vmul.f32 %v1787, %v131
    %v2008 = vmul.f32 %v1791, %v132
    %v2009 = vmul.f32 %v1795, %v133
    %v2010 = vmul.f32 %v1799, %v134
    %v2011 = vmul.f32 %v1803, %v135
    %v2012 = vmul.f32 %v1807, %v136
    %v2013 = vmul.f32 %v1811, %v137
    %v2014 = vmul.f32 %v1815, %v138
    %v2015 = vmul.f32 %v1819, %v139
    %v2016 = vmul.f32 %v1823, %v140
    %v2017 = vmul.f32 %v1827, %v141
    %v2018 = vmul.f32 %v1831, %v142
    %v2019 = vmul.f32 %v1835, %v143
    %v2020 = vmul.f32 %v1839, %v144
    %v2021 = vmul.f32 %v1843, %v145
    %v2022 = vmul.f32 %v1847, %v146
    %v2023 = vmul.f32 %v1850, %v147
    %v2024 = vmul.f32 %v1854, %v148
    %v2025 = vmul.f32 %v1858, %v149
    %v2026 = vmul.f32 %v1862, %v150
    %v2027 = vmul.f32 %v1866, %v151
    %v2028 = vmul.f32 %v1870, %v152
    %v2029 = vmul.f32 %v1874, %v153
    %v2030 = vmul.f32 %v1878, %v154
    %v2031 = vmul.f32 %v1882, %v155
    %v2032 = vmul.f32 %v1886, %v156
    %v2033 = vmul.f32 %v1890, %v157
    %v2034 = vmul.f32 %v1894, %v158
    %v2035 = vmul.f32 %v1898, %v159
    %v2036 = vmul.f32 %v1902, %v160
    %v2037 = vmul.f32 %v1906, %v161
    %v2038 = vmul.f32 %v1910, %v162
    %v2039 = vadd.f32 %v1911, %v1912
    %v2040 = vadd.f32 %v2039, %v1913
    %v2041 = vadd.f32 %v2040, %v1914
    %v2042 = vadd.f32 %v2041, %v1915
    %v2043 = vadd.f32 %v2042, %v1916
    %v2044 = vadd.f32 %v2043, %v1917
    %v2045 = vadd.f32 %v2044, %v1918
    %v2046 = vadd.f32 %v2045, %v1919
    %v2047 = vadd.f32 %v2046, %v1920
    %v2048 = vadd.f32 %v2047, %v1921
    %v2049 = vadd.f32 %v2048, %v1922
    %v2050 = vadd.f32 %v2049, %v1923
    %v2051 = vadd.f32 %v2050, %v1924
    %v2052 = vadd.f32 %v2051, %v1925
    %v2053 = vadd.f32 %v2052, %v1926
    %v2054 = vrot.slane %v2053, 4
    %v2055 = vadd.f32 %v2053, %v2054
    %v2056 = vrot.slane %v2055, 2
    %v2057 = vadd.f32 %v2055, %v2056
    %v2058 = vrot.slane %v2057, 1
    %v2059 = vadd.f32 %v2057, %v2058
    %v2060 = vadd.f32 %v1927, %v1928
    %v2061 = vadd.f32 %v2060, %v1929
    %v2062 = vadd.f32 %v2061, %v1930
    %v2063 = vadd.f32 %v2062, %v1931
    %v2064 = vadd.f32 %v2063, %v1932
    %v2065 = vadd.f32 %v2064, %v1933
    %v2066 = vadd.f32 %v2065, %v1934
    %v2067 = vadd.f32 %v2066, %v1935
    %v2068 = vadd.f32 %v2067, %v1936
    %v2069 = vadd.f32 %v2068, %v1937
    %v2070 = vadd.f32 %v2069, %v1938
    %v2071 = vadd.f32 %v2070, %v1939
    %v2072 = vadd.f32 %v2071, %v1940
    %v2073 = vadd.f32 %v2072, %v1941
    %v2074 = vadd.f32 %v2073, %v1942
    %v2075 = vrot.slane %v2074, 4
    %v2076 = vadd.f32 %v2074, %v2075
    %v2077 = vrot.slane %v2076, 2
    %v2078 = vadd.f32 %v2076, %v2077
    %v2079 = vrot.slane %v2078, 1
    %v2080 = vadd.f32 %v2078, %v2079
    %v2081 = vadd.f32 %v1943, %v1944
    %v2082 = vadd.f32 %v2081, %v1945
    %v2083 = vadd.f32 %v2082, %v1946
    %v2084 = vadd.f32 %v2083, %v1947
    %v2085 = vadd.f32 %v2084, %v1948
    %v2086 = vadd.f32 %v2085, %v1949
    %v2087 = vadd.f32 %v2086, %v1950
    %v2088 = vadd.f32 %v2087, %v1951
    %v2089 = vadd.f32 %v2088, %v1952
    %v2090 = vadd.f32 %v2089, %v1953
    %v2091 = vadd.f32 %v2090, %v1954
    %v2092 = vadd.f32 %v2091, %v1955
    %v2093 = vadd.f32 %v2092, %v1956
    %v2094 = vadd.f32 %v2093, %v1957
    %v2095 = vadd.f32 %v2094, %v1958
    %v2096 = vrot.slane %v2095, 4
    %v2097 = vadd.f32 %v2095, %v2096
    %v2098 = vrot.slane %v2097, 2
    %v2099 = vadd.f32 %v2097, %v2098
    %v2100 = vrot.slane %v2099, 1
    %v2101 = vadd.f32 %v2099, %v2100
    %v2102 = vadd.f32 %v1959, %v1960
    %v2103 = vadd.f32 %v2102, %v1961
    %v2104 = vadd.f32 %v2103, %v1962
    %v2105 = vadd.f32 %v2104, %v1963
    %v2106 = vadd.f32 %v2105, %v1964
    %v2107 = vadd.f32 %v2106, %v1965
    %v2108 = vadd.f32 %v2107, %v1966
    %v2109 = vadd.f32 %v2108, %v1967
    %v2110 = vadd.f32 %v2109, %v1968
    %v2111 = vadd.f32 %v2110, %v1969
    %v2112 = vadd.f32 %v2111, %v1970
    %v2113 = vadd.f32 %v2112, %v1971
    %v2114 = vadd.f32 %v2113, %v1972
    %v2115 = vadd.f32 %v2114, %v1973
    %v2116 = vadd.f32 %v2115, %v1974
    %v2117 = vrot.slane %v2116, 4
    %v2118 = vadd.f32 %v2116, %v2117
    %v2119 = vrot.slane %v2118, 2
    %v2120 = vadd.f32 %v2118, %v2119
    %v2121 = vrot.slane %v2120, 1
    %v2122 = vadd.f32 %v2120, %v2121
    %v2123 = vadd.f32 %v1975, %v1976
    %v2124 = vadd.f32 %v2123, %v1977
    %v2125 = vadd.f32 %v2124, %v1978
    %v2126 = vadd.f32 %v2125, %v1979
    %v2127 = vadd.f32 %v2126, %v1980
    %v2128 = vadd.f32 %v2127, %v1981
    %v2129 = vadd.f32 %v2128, %v1982
    %v2130 = vadd.f32 %v2129, %v1983
    %v2131 = vadd.f32 %v2130, %v1984
    %v2132 = vadd.f32 %v2131, %v1985
    %v2133 = vadd.f32 %v2132, %v1986
    %v2134 = vadd.f32 %v2133, %v1987
    %v2135 = vadd.f32 %v2134, %v1988
    %v2136 = vadd.f32 %v2135, %v1989
    %v2137 = vadd.f32 %v2136, %v1990
    %v2138 = vrot.slane %v2137, 4
    %v2139 = vadd.f32 %v2137, %v2138
    %v2140 = vrot.slane %v2139, 2
    %v2141 = vadd.f32 %v2139, %v2140
    %v2142 = vrot.slane %v2141, 1
    %v2143 = vadd.f32 %v2141, %v2142
    %v2144 = vadd.f32 %v1991, %v1992
    %v2145 = vadd.f32 %v2144, %v1993
    %v2146 = vadd.f32 %v2145, %v1994
    %v2147 = vadd.f32 %v2146, %v1995
    %v2148 = vadd.f32 %v2147, %v1996
    %v2149 = vadd.f32 %v2148, %v1997
    %v2150 = vadd.f32 %v2149, %v1998
    %v2151 = vadd.f32 %v2150, %v1999
    %v2152 = vadd.f32 %v2151, %v2000
    %v2153 = vadd.f32 %v2152, %v2001
    %v2154 = vadd.f32 %v2153, %v2002
    %v2155 = vadd.f32 %v2154, %v2003
    %v2156 = vadd.f32 %v2155, %v2004
    %v2157 = vadd.f32 %v2156, %v2005
    %v2158 = vadd.f32 %v2157, %v2006
    %v2159 = vrot.slane %v2158, 4
    %v2160 = vadd.f32 %v2158, %v2159
    %v2161 = vrot.slane %v2160, 2
    %v2162 = vadd.f32 %v2160, %v2161
    %v2163 = vrot.slane %v2162, 1
    %v2164 = vadd.f32 %v2162, %v2163
    %v2165 = vadd.f32 %v2007, %v2008
    %v2166 = vadd.f32 %v2165, %v2009
    %v2167 = vadd.f32 %v2166, %v2010
    %v2168 = vadd.f32 %v2167, %v2011
    %v2169 = vadd.f32 %v2168, %v2012
    %v2170 = vadd.f32 %v2169, %v2013
    %v2171 = vadd.f32 %v2170, %v2014
    %v2172 = vadd.f32 %v2171, %v2015
    %v2173 = vadd.f32 %v2172, %v2016
    %v2174 = vadd.f32 %v2173, %v2017
    %v2175 = vadd.f32 %v2174, %v2018
    %v2176 = vadd.f32 %v2175, %v2019
    %v2177 = vadd.f32 %v2176, %v2020
    %v2178 = vadd.f32 %v2177, %v2021
    %v2179 = vadd.f32 %v2178, %v2022
    %v2180 = vrot.slane %v2179, 4
    %v2181 = vadd.f32 %v2179, %v2180
    %v2182 = vrot.slane %v2181, 2
    %v2183 = vadd.f32 %v2181, %v2182
    %v2184 = vrot.slane %v2183, 1
    %v2185 = vadd.f32 %v2183, %v2184
    %v2186 = vadd.f32 %v2023, %v2024
    %v2187 = vadd.f32 %v2186, %v2025
    %v2188 = vadd.f32 %v2187, %v2026
    %v2189 = vadd.f32 %v2188, %v2027
    %v2190 = vadd.f32 %v2189, %v2028
    %v2191 = vadd.f32 %v2190, %v2029
    %v2192 = vadd.f32 %v2191, %v2030
    %v2193 = vadd.f32 %v2192, %v2031
    %v2194 = vadd.f32 %v2193, %v2032
    %v2195 = vadd.f32 %v2194, %v2033
    %v2196 = vadd.f32 %v2195, %v2034
    %v2197 = vadd.f32 %v2196, %v2035
    %v2198 = vadd.f32 %v2197, %v2036
    %v2199 = vadd.f32 %v2198, %v2037
    %v2200 = vadd.f32 %v2199, %v2038
    %v2201 = vrot.slane %v2200, 4
    %v2202 = vadd.f32 %v2200, %v2201
    %v2203 = vrot.slane %v2202, 2
    %v2204 = vadd.f32 %v2202, %v2203
    %v2205 = vrot.slane %v2204, 1
    %v2206 = vadd.f32 %v2204, %v2205
    %vm2215 = vcmask 1041409
    %v2216 = vsel %vm2215, %v2080, %v2059
    %vm2217 = vcmask 1042434
    %v2218 = vsel %vm2217, %v2101, %v2216
    %vm2219 = vcmask 1043459
    %v2220 = vsel %vm2219, %v2122, %v2218
    %vm2221 = vcmask 1044484
    %v2222 = vsel %vm2221, %v2143, %v2220
    %vm2223 = vcmask 1045509
    %v2224 = vsel %vm2223, %v2164, %v2222
    %vm2225 = vcmask 1046534
    %v2226 = vsel %vm2225, %v2185, %v2224
    %vm2227 = vcmask 1047559
    %v2228 = vsel %vm2227, %v2206, %v2226
    %2230 = vst [vmem:[#allocation5] sm:$0xff] %v2228
    // Predicated region
    $region22: #{tpu_custom_call.1} parent=1 // pred_check
      _
    $region23: #{tpu_custom_call.1} parent=1 // pred_check_branch
      %2232 = sbr.rel (0) target = $region25
    $region24: #{tpu_custom_call.1} parent=1 // pred_region
      %s2234 = ssub.s32 128, 128
      %2235 = vsyncadd [#allocation4], %s2234
      %s2237 = sshll.u32 [#allocation5], 4
      %s2238 = int_to_ptr.vmem [resolvable:$true] %s2237
      %2240 = dma.vmem_to_hbm [thread:$0]  %s2238, 128, %s4, [#allocation4]
    $region25: #{tpu_custom_call.1} parent=1 // pred_fallthru
      _
    // Predicated region
    $region26: #{tpu_custom_call.1} parent=1 // pred_check
      _
    $region27: #{tpu_custom_call.1} parent=1 // pred_check_branch
      %2242 = sbr.rel (0) target = $region29
    $region28: #{tpu_custom_call.1} parent=1 // pred_region
      %s2244 = ssub.s32 512, 512
      %2245 = vsyncadd [#allocation7], %s2244
      %s2246 = sshll.u32 [#allocation6], 4
      %s2247 = int_to_ptr.vmem [resolvable:$true] %s2246
      %2252 = dma.vmem_to_hbm [thread:$0]  %s2247, 512, %s5, [#allocation7], 64, 64, 4
    $region29: #{tpu_custom_call.1} parent=1 // pred_fallthru
      _
    // Predicated region
    $region30: #{tpu_custom_call.1} parent=1 // pred_check
      _
    $region31: #{tpu_custom_call.1} parent=1 // pred_check_branch
      %2254 = sbr.rel (0) target = $region33
    $region32: #{tpu_custom_call.1} parent=1 // pred_region
      %2255 = dma.done [#allocation4], 128
    $region33: #{tpu_custom_call.1} parent=1 // pred_fallthru
      _
    // Predicated region
    $region34: #{tpu_custom_call.1} parent=1 // pred_check
      _
    $region35: #{tpu_custom_call.1} parent=1 // pred_check_branch
      %2257 = sbr.rel (0) target = $region37
    $region36: #{tpu_custom_call.1} parent=1 // pred_region
      %2258 = dma.done [#allocation7], 512
    $region37: #{tpu_custom_call.1} parent=1 // pred_fallthru
      _
    %2259 = vsyncpa [#allocation3], 1
    %2260 = vsyncpa [#allocation4], 1
    %2261 = vsyncpa [#allocation7], 1

</llo_original>
